<compile_context>
chip_gen: v7x
topology: tpu7x:2x2x1
jax: 0.10.0
libtpu: 0.0.40
codegen_flags: <defaults>
</compile_context>

<pallas_src>
import jax
import jax.numpy as jnp
from jax.experimental import pallas as pl
from jax.experimental.pallas import tpu as pltpu


def decoder_kernel(tok_ref,                       # SMEM (B,) int32  (scalar prefetch)
                   embed_hbm,                     # HBM  (V_emb, Hp) f32 (manual gather)
                   h0_ref, c0_ref,                # VMEM (B, Hp) f32
                   wih_ref, whh_ref, bg_ref,      # VMEM (Hp,4Hp) bf16 x2, (1,4Hp) f32
                   wo_ref, bo_ref,                # VMEM (Hp, tv) bf16, (1, tv) f32
                   logp_ref, hc_ref,              # OUT  (B, Vp) f32, (B, 2Hp) f32 (resident)
                   x_vmem, h_bf, m_s, l_s, gather_sem):
    """Grid axis 0 tiles the (padded) vocab.  The LSTM cell runs once at j==0; every grid
    step streams one contiguous W_out tile, writes its logits into the resident logp
    block and updates a running logsumexp; the last step normalizes in place."""
    j = pl.program_id(0)
    nv = pl.num_programs(0)
    B, Hp = h0_ref.shape
    tv = wo_ref.shape[-1]

    @pl.when(j == 0)
    def _():
        # Fused embedding gather: B row DMAs straight from the HBM-resident table.
        copies = [
            pltpu.make_async_copy(embed_hbm.at[pl.ds(tok_ref[b], 1)],
                                  x_vmem.at[pl.ds(b, 1)],
                                  gather_sem.at[b])
            for b in range(B)
        ]
        for cp in copies:
            cp.start()
        for cp in copies:
            cp.wait()

        # F.relu on the embedded token, then fused gate matmuls on the MXU
        # (bf16 inputs, f32 accumulation).  Gate order [i, f, g, o], each Hp lanes wide.
        x = jnp.maximum(x_vmem[...], 0.0).astype(jnp.bfloat16)
        h0 = h0_ref[...].astype(jnp.bfloat16)
        gates = (jnp.dot(x, wih_ref[...], preferred_element_type=jnp.float32)
                 + jnp.dot(h0, whh_ref[...], preferred_element_type=jnp.float32)
                 + bg_ref[...])                                   # (B, 4Hp)
        i_g = jax.nn.sigmoid(gates[:, 0 * Hp:1 * Hp])
        f_g = jax.nn.sigmoid(gates[:, 1 * Hp:2 * Hp])
        g_g = jnp.tanh(gates[:, 2 * Hp:3 * Hp])
        o_g = jax.nn.sigmoid(gates[:, 3 * Hp:4 * Hp])
        c = f_g * c0_ref[...] + i_g * g_g
        h = o_g * jnp.tanh(c)
        hc_ref[:, :Hp] = h                                        # lane-aligned slice stores
        hc_ref[:, Hp:] = c                                        # (no concat temp)
        h_bf[...] = h.astype(jnp.bfloat16)                        # bf16 h for the projection
        m_s[...] = jnp.full(m_s.shape, -jnp.inf, jnp.float32)
        l_s[...] = jnp.zeros(l_s.shape, jnp.float32)

    # Output-projection tile: (B, Hp) @ (Hp, tv) + (1, tv), written into the resident logp.
    logits = (jnp.dot(h_bf[...], wo_ref[...], preferred_element_type=jnp.float32)
              + bo_ref[...])
    col0 = pl.multiple_of(j * tv, tv)
    logp_ref[:, pl.ds(col0, tv)] = logits

    # Online logsumexp across vocab tiles (padded columns carry bias -1e30 -> exp == 0).
    m_prev = m_s[...]
    m_new = jnp.maximum(m_prev, jnp.max(logits, axis=-1, keepdims=True))
    l_s[...] = (l_s[...] * jnp.exp(m_prev - m_new)
                + jnp.sum(jnp.exp(logits - m_new), axis=-1, keepdims=True))
    m_s[...] = m_new

    # Final step: normalize the whole resident block in place -> log-softmax.
    @pl.when(j == nv - 1)
    def _():
        logp_ref[...] = logp_ref[...] - (m_s[...] + jnp.log(l_s[...]))


def _round_up(x, m):
    return ((x + m - 1) // m) * m


def _pick_vocab_tile(V, Hp, max_batch, budget_bytes):
    """Largest lane tile whose working set (double-buffered W_out tile + VMEM-resident
    logp block + const LSTM weights) stays under the VMEM budget."""
    const_bytes = 2 * 2 * (Hp * 4 * Hp * 2)           # W_ih^T, W_hh^T (bf16, 2 bufs each)
    const_bytes += 2 * (4 * Hp * 4)                   # fused gate bias
    const_bytes += 2 * 2 * (max_batch * Hp * 4)       # h0, c0
    const_bytes += max_batch * 2 * Hp * 4             # hc output block
    const_bytes += max_batch * (Hp * 6 + 16)          # x / h_bf / m / l scratch (loose)
    for tv in (2048, 1024, 512, 256, 128):
        vp = _round_up(V, tv)
        need = (const_bytes
                + max_batch * vp * 4                  # resident logp block
                + 2 * (Hp * tv * 2 + tv * 4))         # double-buffered W_out + bias tiles
        if need <= budget_bytes:
            return tv
    return 128


def pack_decoder_params(embed_w, w_ih, w_hh, b_ih, b_hh, w_out, b_out,
                        max_batch=128, vmem_budget_bytes=24 * 1024 * 1024):
    """One-time host-side repack (hoist out of any decode loop).

    PyTorch layouts in:  embed (V,H); lstm weight_ih/weight_hh (4H,H) gates [i,f,g,o];
                         bias_ih/bias_hh (4H,); out.weight (V,H); out.bias (V,).
    """
    V_emb, H = embed_w.shape
    V = w_out.shape[0]
    Hp = _round_up(H, 128)                            # lane-aligned hidden dim
    tv = _pick_vocab_tile(V, Hp, max_batch, vmem_budget_bytes)
    Vp = _round_up(V, tv)
    nv = Vp // tv

    # Embedding table: pad feature dim with zeros (ReLU keeps them zero); stays in HBM.
    embed_p = jnp.zeros((V_emb, Hp), jnp.float32).at[:, :H].set(embed_w.astype(jnp.float32))

    # LSTM gate weights: (4H,H) -> per-gate (H,H) blocks, zero-padded to (Hp,Hp), laid out
    # transposed as (Hp, 4Hp) so the kernel does x @ W^T with gate blocks each Hp wide.
    # Padded gate units produce h = c = 0 (sigmoid(0)*tanh(0) etc.), so padding is inert.
    def pack_gates_t(w):
        w4 = w.reshape(4, H, H).astype(jnp.float32)
        w4p = jnp.zeros((4, Hp, Hp), jnp.float32).at[:, :H, :H].set(w4)
        return jnp.transpose(w4p, (2, 0, 1)).reshape(Hp, 4 * Hp).astype(jnp.bfloat16)

    b4 = (b_ih + b_hh).reshape(4, H).astype(jnp.float32)
    b_gates = jnp.zeros((4, Hp), jnp.float32).at[:, :H].set(b4).reshape(1, 4 * Hp)

    # Output projection: W_out^T padded to (Hp, Vp), repacked into contiguous (nv, Hp, tv)
    # tiles so each grid step's weight DMA is one contiguous slab.
    wout_t = jnp.zeros((Hp, Vp), jnp.float32).at[:H, :V].set(w_out.T.astype(jnp.float32))
    wout_tiles = jnp.transpose(wout_t.reshape(Hp, nv, tv), (1, 0, 2)).astype(jnp.bfloat16)

    # Padded vocab columns get a huge negative bias -> exp underflows to 0 in the online
    # logsumexp; the wrapper slices them off.
    b_out_p = jnp.full((Vp,), -1e30, jnp.float32).at[:V].set(b_out.astype(jnp.float32))

    return dict(H=H, Hp=Hp, V=V, Vp=Vp, tv=tv, nv=nv,
                embed_w=embed_p,
                wih_t=pack_gates_t(w_ih), whh_t=pack_gates_t(w_hh), b_gates=b_gates,
                wout_tiles=wout_tiles, b_out=b_out_p.reshape(1, Vp))


def decoder_forward(token_ids, params, hidden=None):
    """Mirrors Decoder.forward(input, hidden=None, batch_size=B) for one time step."""
    B = token_ids.shape[0]
    H, Hp = params["H"], params["Hp"]
    V, Vp, tv, nv = params["V"], params["Vp"], params["tv"], params["nv"]

    if hidden is None:
        h0 = jnp.zeros((B, Hp), jnp.float32)
        c0 = jnp.zeros((B, Hp), jnp.float32)
    else:
        h0 = jnp.zeros((B, Hp), jnp.float32).at[:, :H].set(hidden[0][0])
        c0 = jnp.zeros((B, Hp), jnp.float32).at[:, :H].set(hidden[1][0])

    const = lambda j, tok: (0, 0)

    # NOTE: for very large hidden sizes (H >= ~1024 on v7x's 64 MiB VMEM) the
    # double-buffered gate weights held across the vocab loop get expensive; split the
    # LSTM cell into its own tiny pallas_call in that regime.
    # TODO(synk): v7x dual-TensorCore split of the vocab axis (per-core partial logsumexp
    # + combine) conflicts with the fused single-pass normalization; revisit if the
    # W_out stream becomes the bottleneck there.
    logp_p, hc = pl.pallas_call(
        decoder_kernel,
        out_shape=(jax.ShapeDtypeStruct((B, Vp), jnp.float32),      # log-softmax (padded V)
                   jax.ShapeDtypeStruct((B, 2 * Hp), jnp.float32)), # packed [h_n | c_n]
        grid_spec=pltpu.PrefetchScalarGridSpec(
            num_scalar_prefetch=1,                                   # token ids -> SMEM
            grid=(nv,),
            in_specs=[pl.BlockSpec(memory_space=pl.ANY),             # embed table (HBM)
                      pl.BlockSpec((B, Hp), const),                  # h0
                      pl.BlockSpec((B, Hp), const),                  # c0
                      pl.BlockSpec((Hp, 4 * Hp), const),             # W_ih^T (bf16)
                      pl.BlockSpec((Hp, 4 * Hp), const),             # W_hh^T (bf16)
                      pl.BlockSpec((1, 4 * Hp), const),              # b_ih + b_hh
                      pl.BlockSpec((None, Hp, tv),                   # contiguous W_out tile
                                   lambda j, tok: (j, 0, 0)),
                      pl.BlockSpec((1, tv), lambda j, tok: (0, j))], # b_out tile
            out_specs=[pl.BlockSpec((B, Vp), const),                 # logp (VMEM-resident)
                       pl.BlockSpec((B, 2 * Hp), const)],            # hc   (VMEM-resident)
            scratch_shapes=[pltpu.VMEM((B, Hp), jnp.float32),        # gathered embeddings
                            pltpu.VMEM((B, Hp), jnp.bfloat16),       # h for the projection
                            pltpu.VMEM((B, 1), jnp.float32),         # running max
                            pltpu.VMEM((B, 1), jnp.float32),         # running sum-exp
                            pltpu.SemaphoreType.DMA((B,))]),         # gather semaphores
        compiler_params=pltpu.CompilerParams(
            dimension_semantics=("arbitrary",),
            vmem_limit_bytes=64 * 1024 * 1024),
    )(token_ids.astype(jnp.int32), params["embed_w"], h0, c0,
      params["wih_t"], params["whh_t"], params["b_gates"],
      params["wout_tiles"], params["b_out"])

    logp = logp_p[:, :V]
    hn = hc[:, :H]
    cn = hc[:, Hp:Hp + H]
    # PyTorch returns hidden = (h_n, c_n), each of shape (num_layers=1, B, H).
    return logp, (hn[None], cn[None])


if __name__ == "__main__":
    key = jax.random.PRNGKey(0)
    B, H, V = 2, 100, 5000        # small decode-step shapes (H padded to 128 internally)
    ks = jax.random.split(key, 8)

    # Deterministic synthetic parameters in PyTorch layouts.
    embed_w = jax.random.normal(ks[0], (V, H), jnp.float32) * 0.1
    w_ih    = jax.random.normal(ks[1], (4 * H, H), jnp.float32) * 0.1   # lstm.weight_ih_l0
    w_hh    = jax.random.normal(ks[2], (4 * H, H), jnp.float32) * 0.1   # lstm.weight_hh_l0
    b_ih    = jax.random.normal(ks[3], (4 * H,), jnp.float32) * 0.1
    b_hh    = jax.random.normal(ks[4], (4 * H,), jnp.float32) * 0.1
    w_out   = jax.random.normal(ks[5], (V, H), jnp.float32) * 0.1       # out.weight
    b_out   = jax.random.normal(ks[6], (V,), jnp.float32) * 0.1         # out.bias
    token_ids = jax.random.randint(ks[7], (B,), 0, V, dtype=jnp.int32)

    params = pack_decoder_params(embed_w, w_ih, w_hh, b_ih, b_hh, w_out, b_out,
                                 max_batch=B)
    logp, (hn, cn) = decoder_forward(token_ids, params)
    jax.block_until_ready((logp, hn, cn))

    # Pure-JAX reference of the same forward (same bf16 weight casts, f32 accumulation).
    x_r = jnp.maximum(jnp.take(embed_w, token_ids, axis=0), 0.0).astype(jnp.bfloat16)
    h0_r = jnp.zeros((B, H), jnp.float32)
    c0_r = jnp.zeros((B, H), jnp.float32)
    gates_r = (jnp.dot(x_r, w_ih.T.astype(jnp.bfloat16), preferred_element_type=jnp.float32)
               + jnp.dot(h0_r.astype(jnp.bfloat16), w_hh.T.astype(jnp.bfloat16),
                         preferred_element_type=jnp.float32)
               + (b_ih + b_hh)[None, :])
    i_r = jax.nn.sigmoid(gates_r[:, :H])
    f_r = jax.nn.sigmoid(gates_r[:, H:2 * H])
    g_r = jnp.tanh(gates_r[:, 2 * H:3 * H])
    o_r = jax.nn.sigmoid(gates_r[:, 3 * H:])
    c_r = f_r * c0_r + i_r * g_r
    h_r = o_r * jnp.tanh(c_r)
    logits_r = (jnp.dot(h_r.astype(jnp.bfloat16), w_out.T.astype(jnp.bfloat16),
                        preferred_element_type=jnp.float32) + b_out[None, :])
    logp_r = jax.nn.log_softmax(logits_r, axis=1)

    assert logp.shape == (B, V) and hn.shape == (1, B, H) and cn.shape == (1, B, H)
    assert jnp.allclose(logp, logp_r, atol=2e-3), "log-softmax output mismatch"
    assert jnp.allclose(hn[0], h_r, atol=2e-3), "h_n mismatch"
    assert jnp.allclose(cn[0], c_r, atol=2e-3), "c_n mismatch"
    print("KERNEL_OK")
</pallas_src>

<mosaic_0001>
module attributes {stable_mosaic.version = 11 : i64} {
  func.func @decoder_kernel(%arg0: i32, %arg1: memref<2xi32, #tpu.memory_space<smem>>, %arg2: memref<5000x128xf32, #tpu.memory_space<any>>, %arg3: memref<2x128xf32, #tpu.memory_space<vmem>>, %arg4: memref<2x128xf32, #tpu.memory_space<vmem>>, %arg5: memref<128x512xbf16, #tpu.memory_space<vmem>>, %arg6: memref<128x512xbf16, #tpu.memory_space<vmem>>, %arg7: memref<1x512xf32, #tpu.memory_space<vmem>>, %arg8: memref<1x128x2048xbf16, #tpu.memory_space<vmem>>, %arg9: memref<1x2048xf32, #tpu.memory_space<vmem>>, %arg10: memref<2x6144xf32, #tpu.memory_space<vmem>>, %arg11: memref<2x256xf32, #tpu.memory_space<vmem>>, %arg12: memref<2x128xf32, #tpu.memory_space<vmem>>, %arg13: memref<2x128xbf16, #tpu.memory_space<vmem>>, %arg14: memref<2x1xf32, #tpu.memory_space<vmem>>, %arg15: memref<2x1xf32, #tpu.memory_space<vmem>>, %arg16: memref<2x!tpu.dma_semaphore, #tpu.memory_space<semaphore_mem>>) attributes {dimension_semantics = [#tpu.dimension_semantics<arbitrary>], iteration_bounds = array<i64: 3>, scalar_prefetch = 1 : i64, scratch_operands = 5 : i64, tpu.core_type = #tpu.core_type<tc>, window_params = [{}, {pipeline_mode = #tpu.pipeline_mode<synchronous>, transform_indices = @transform_1, window_bounds = array<i64: 2, 128>}, {pipeline_mode = #tpu.pipeline_mode<synchronous>, transform_indices = @transform_2, window_bounds = array<i64: 2, 128>}, {pipeline_mode = #tpu.pipeline_mode<synchronous>, transform_indices = @transform_3, window_bounds = array<i64: 128, 512>}, {pipeline_mode = #tpu.pipeline_mode<synchronous>, transform_indices = @transform_4, window_bounds = array<i64: 128, 512>}, {pipeline_mode = #tpu.pipeline_mode<synchronous>, transform_indices = @transform_5, window_bounds = array<i64: 1, 512>}, {transform_indices = @transform_6, window_bounds = array<i64: 1, 128, 2048>}, {transform_indices = @transform_7, window_bounds = array<i64: 1, 2048>}, {pipeline_mode = #tpu.pipeline_mode<synchronous>, transform_indices = @transform_8, window_bounds = array<i64: 2, 6144>}, {pipeline_mode = #tpu.pipeline_mode<synchronous>, transform_indices = @transform_9, window_bounds = array<i64: 2, 256>}]} {
    %c0_i32 = arith.constant 0 : i32
    %0 = arith.cmpi eq, %arg0, %c0_i32 : i32
    %1 = arith.extui %0 : i1 to i32
    %c0_i32_0 = arith.constant 0 : i32
    %2 = arith.cmpi ne, %1, %c0_i32_0 : i32
    scf.if %2 {
      %c0_19 = arith.constant 0 : index
      %33 = memref.load %arg1[%c0_19] : memref<2xi32, #tpu.memory_space<smem>>
      %c1 = arith.constant 1 : index
      %34 = memref.load %arg1[%c1] : memref<2xi32, #tpu.memory_space<smem>>
      %c0_i32_20 = arith.constant 0 : i32
      %c0_i32_21 = arith.constant 0 : i32
      %35 = tpu.memref_slice %arg2[%33, %c0_i32_21] : memref<5000x128xf32, #tpu.memory_space<any>> -> memref<1x128xf32, #tpu.memory_space<any>>
      %c0_i32_22 = arith.constant 0 : i32
      %c0_i32_23 = arith.constant 0 : i32
      %36 = tpu.memref_slice %arg12[%c0_i32_22, %c0_i32_23] : memref<2x128xf32, #tpu.memory_space<vmem>> -> memref<1x128xf32, #tpu.memory_space<vmem>>
      %37 = tpu.memref_slice %arg16[%c0_i32_20] : memref<2x!tpu.dma_semaphore, #tpu.memory_space<semaphore_mem>> -> memref<1x!tpu.dma_semaphore, #tpu.memory_space<semaphore_mem>>
      %38 = tpu.memref_squeeze %37 : memref<1x!tpu.dma_semaphore, #tpu.memory_space<semaphore_mem>> -> memref<!tpu.dma_semaphore, #tpu.memory_space<semaphore_mem>>
      tpu.enqueue_dma source(%35 : memref<1x128xf32, #tpu.memory_space<any>>) target(%36 : memref<1x128xf32, #tpu.memory_space<vmem>>) target_semaphore(%38 : memref<!tpu.dma_semaphore, #tpu.memory_space<semaphore_mem>>)
      %c1_i32 = arith.constant 1 : i32
      %c0_i32_24 = arith.constant 0 : i32
      %39 = tpu.memref_slice %arg2[%34, %c0_i32_24] : memref<5000x128xf32, #tpu.memory_space<any>> -> memref<1x128xf32, #tpu.memory_space<any>>
      %c1_i32_25 = arith.constant 1 : i32
      %c0_i32_26 = arith.constant 0 : i32
      %40 = tpu.memref_slice %arg12[%c1_i32_25, %c0_i32_26] : memref<2x128xf32, #tpu.memory_space<vmem>> -> memref<1x128xf32, #tpu.memory_space<vmem>>
      %41 = tpu.memref_slice %arg16[%c1_i32] : memref<2x!tpu.dma_semaphore, #tpu.memory_space<semaphore_mem>> -> memref<1x!tpu.dma_semaphore, #tpu.memory_space<semaphore_mem>>
      %42 = tpu.memref_squeeze %41 : memref<1x!tpu.dma_semaphore, #tpu.memory_space<semaphore_mem>> -> memref<!tpu.dma_semaphore, #tpu.memory_space<semaphore_mem>>
      tpu.enqueue_dma source(%39 : memref<1x128xf32, #tpu.memory_space<any>>) target(%40 : memref<1x128xf32, #tpu.memory_space<vmem>>) target_semaphore(%42 : memref<!tpu.dma_semaphore, #tpu.memory_space<semaphore_mem>>)
      %c0_i32_27 = arith.constant 0 : i32
      %c0_i32_28 = arith.constant 0 : i32
      %43 = tpu.memref_slice %arg2[%33, %c0_i32_28] : memref<5000x128xf32, #tpu.memory_space<any>> -> memref<1x128xf32, #tpu.memory_space<any>>
      %c0_i32_29 = arith.constant 0 : i32
      %c0_i32_30 = arith.constant 0 : i32
      %44 = tpu.memref_slice %arg12[%c0_i32_29, %c0_i32_30] : memref<2x128xf32, #tpu.memory_space<vmem>> -> memref<1x128xf32, #tpu.memory_space<vmem>>
      %45 = tpu.memref_slice %arg16[%c0_i32_27] : memref<2x!tpu.dma_semaphore, #tpu.memory_space<semaphore_mem>> -> memref<1x!tpu.dma_semaphore, #tpu.memory_space<semaphore_mem>>
      %46 = tpu.memref_squeeze %45 : memref<1x!tpu.dma_semaphore, #tpu.memory_space<semaphore_mem>> -> memref<!tpu.dma_semaphore, #tpu.memory_space<semaphore_mem>>
      tpu.wait_dma2 semaphore(%46 : memref<!tpu.dma_semaphore, #tpu.memory_space<semaphore_mem>>) src(%43 : memref<1x128xf32, #tpu.memory_space<any>>) dst(%44 : memref<1x128xf32, #tpu.memory_space<vmem>>)
      %c1_i32_31 = arith.constant 1 : i32
      %c0_i32_32 = arith.constant 0 : i32
      %47 = tpu.memref_slice %arg2[%34, %c0_i32_32] : memref<5000x128xf32, #tpu.memory_space<any>> -> memref<1x128xf32, #tpu.memory_space<any>>
      %c1_i32_33 = arith.constant 1 : i32
      %c0_i32_34 = arith.constant 0 : i32
      %48 = tpu.memref_slice %arg12[%c1_i32_33, %c0_i32_34] : memref<2x128xf32, #tpu.memory_space<vmem>> -> memref<1x128xf32, #tpu.memory_space<vmem>>
      %49 = tpu.memref_slice %arg16[%c1_i32_31] : memref<2x!tpu.dma_semaphore, #tpu.memory_space<semaphore_mem>> -> memref<1x!tpu.dma_semaphore, #tpu.memory_space<semaphore_mem>>
      %50 = tpu.memref_squeeze %49 : memref<1x!tpu.dma_semaphore, #tpu.memory_space<semaphore_mem>> -> memref<!tpu.dma_semaphore, #tpu.memory_space<semaphore_mem>>
      tpu.wait_dma2 semaphore(%50 : memref<!tpu.dma_semaphore, #tpu.memory_space<semaphore_mem>>) src(%47 : memref<1x128xf32, #tpu.memory_space<any>>) dst(%48 : memref<1x128xf32, #tpu.memory_space<vmem>>)
      %c0_35 = arith.constant 0 : index
      %c0_36 = arith.constant 0 : index
      %51 = vector.load %arg12[%c0_35, %c0_36] : memref<2x128xf32, #tpu.memory_space<vmem>>, vector<2x128xf32>
      %cst_37 = arith.constant 0.000000e+00 : f32
      %52 = vector.broadcast %cst_37 : f32 to vector<2x128xf32>
      %53 = arith.maximumf %51, %52 : vector<2x128xf32>
      %54 = arith.truncf %53 : vector<2x128xf32> to vector<2x128xbf16>
      %c0_38 = arith.constant 0 : index
      %c0_39 = arith.constant 0 : index
      %55 = vector.load %arg3[%c0_38, %c0_39] : memref<2x128xf32, #tpu.memory_space<vmem>>, vector<2x128xf32>
      %56 = arith.truncf %55 : vector<2x128xf32> to vector<2x128xbf16>
      %c0_40 = arith.constant 0 : index
      %c0_41 = arith.constant 0 : index
      %57 = vector.load %arg5[%c0_40, %c0_41] : memref<128x512xbf16, #tpu.memory_space<vmem>>, vector<128x512xbf16>
      %cst_42 = arith.constant dense<0.000000e+00> : vector<2x512xf32>
      %58 = tpu.matmul %54, %57, %cst_42 {dimension_numbers = #tpu.dot_dimension_numbers<[1], [0], [0], [1], [0, 0, 1, 1], [], []>} : vector<2x128xbf16>, vector<128x512xbf16>, vector<2x512xf32> -> vector<2x512xf32>
      %c0_43 = arith.constant 0 : index
      %c0_44 = arith.constant 0 : index
      %59 = vector.load %arg6[%c0_43, %c0_44] : memref<128x512xbf16, #tpu.memory_space<vmem>>, vector<128x512xbf16>
      %cst_45 = arith.constant dense<0.000000e+00> : vector<2x512xf32>
      %60 = tpu.matmul %56, %59, %cst_45 {dimension_numbers = #tpu.dot_dimension_numbers<[1], [0], [0], [1], [0, 0, 1, 1], [], []>} : vector<2x128xbf16>, vector<128x512xbf16>, vector<2x512xf32> -> vector<2x512xf32>
      %61 = arith.addf %58, %60 : vector<2x512xf32>
      %c0_46 = arith.constant 0 : index
      %c0_47 = arith.constant 0 : index
      %62 = vector.load %arg7[%c0_46, %c0_47] : memref<1x512xf32, #tpu.memory_space<vmem>>, vector<1x512xf32>
      %63 = vector.broadcast %62 : vector<1x512xf32> to vector<2x512xf32>
      %64 = arith.addf %61, %63 : vector<2x512xf32>
      %65 = vector.extract_strided_slice %64 {offsets = [0, 0], sizes = [2, 128], strides = [1, 1]} : vector<2x512xf32> to vector<2x128xf32>
      %66 = arith.negf %65 : vector<2x128xf32>
      %67 = math.exp %66 : vector<2x128xf32>
      %cst_48 = arith.constant 1.000000e+00 : f32
      %68 = vector.broadcast %cst_48 : f32 to vector<2x128xf32>
      %69 = arith.addf %68, %67 : vector<2x128xf32>
      %70 = arith.divf %68, %69 : vector<2x128xf32>
      %71 = vector.extract_strided_slice %64 {offsets = [0, 128], sizes = [2, 128], strides = [1, 1]} : vector<2x512xf32> to vector<2x128xf32>
      %72 = arith.negf %71 : vector<2x128xf32>
      %73 = math.exp %72 : vector<2x128xf32>
      %cst_49 = arith.constant 1.000000e+00 : f32
      %74 = vector.broadcast %cst_49 : f32 to vector<2x128xf32>
      %75 = arith.addf %74, %73 : vector<2x128xf32>
      %76 = arith.divf %74, %75 : vector<2x128xf32>
      %77 = vector.extract_strided_slice %64 {offsets = [0, 256], sizes = [2, 128], strides = [1, 1]} : vector<2x512xf32> to vector<2x128xf32>
      %78 = math.tanh %77 : vector<2x128xf32>
      %79 = vector.extract_strided_slice %64 {offsets = [0, 384], sizes = [2, 128], strides = [1, 1]} : vector<2x512xf32> to vector<2x128xf32>
      %80 = arith.negf %79 : vector<2x128xf32>
      %81 = math.exp %80 : vector<2x128xf32>
      %cst_50 = arith.constant 1.000000e+00 : f32
      %82 = vector.broadcast %cst_50 : f32 to vector<2x128xf32>
      %83 = arith.addf %82, %81 : vector<2x128xf32>
      %84 = arith.divf %82, %83 : vector<2x128xf32>
      %c0_51 = arith.constant 0 : index
      %c0_52 = arith.constant 0 : index
      %85 = vector.load %arg4[%c0_51, %c0_52] : memref<2x128xf32, #tpu.memory_space<vmem>>, vector<2x128xf32>
      %86 = arith.mulf %76, %85 : vector<2x128xf32>
      %87 = arith.mulf %70, %78 : vector<2x128xf32>
      %88 = arith.addf %86, %87 : vector<2x128xf32>
      %89 = math.tanh %88 : vector<2x128xf32>
      %90 = arith.mulf %84, %89 : vector<2x128xf32>
      %c0_53 = arith.constant 0 : index
      %c0_54 = arith.constant 0 : index
      %91 = vector.load %arg11[%c0_53, %c0_54] : memref<2x256xf32, #tpu.memory_space<vmem>>, vector<2x128xf32>
      tpu.vector_store %arg11[%c0_53, %c0_54], %90 {strides = array<i32>} : memref<2x256xf32, #tpu.memory_space<vmem>>, vector<2x128xf32>,
      %c0_55 = arith.constant 0 : index
      %c128 = arith.constant 128 : index
      %92 = vector.load %arg11[%c0_55, %c128] : memref<2x256xf32, #tpu.memory_space<vmem>>, vector<2x128xf32>
      tpu.vector_store %arg11[%c0_55, %c128], %88 {strides = array<i32>} : memref<2x256xf32, #tpu.memory_space<vmem>>, vector<2x128xf32>,
      %93 = arith.truncf %90 : vector<2x128xf32> to vector<2x128xbf16>
      %c0_56 = arith.constant 0 : index
      %c0_57 = arith.constant 0 : index
      %94 = vector.load %arg13[%c0_56, %c0_57] : memref<2x128xbf16, #tpu.memory_space<vmem>>, vector<2x128xbf16>
      tpu.vector_store %arg13[%c0_56, %c0_57], %93 {strides = array<i32>} : memref<2x128xbf16, #tpu.memory_space<vmem>>, vector<2x128xbf16>,
      %cst_58 = arith.constant 0xFF800000 : f32
      %95 = vector.broadcast %cst_58 : f32 to vector<2x1xf32>
      %c0_59 = arith.constant 0 : index
      %c0_60 = arith.constant 0 : index
      %96 = vector.load %arg14[%c0_59, %c0_60] : memref<2x1xf32, #tpu.memory_space<vmem>>, vector<2x1xf32>
      tpu.vector_store %arg14[%c0_59, %c0_60], %95 {strides = array<i32>} : memref<2x1xf32, #tpu.memory_space<vmem>>, vector<2x1xf32>,
      %cst_61 = arith.constant 0.000000e+00 : f32
      %97 = vector.broadcast %cst_61 : f32 to vector<2x1xf32>
      %c0_62 = arith.constant 0 : index
      %c0_63 = arith.constant 0 : index
      %98 = vector.load %arg15[%c0_62, %c0_63] : memref<2x1xf32, #tpu.memory_space<vmem>>, vector<2x1xf32>
      tpu.vector_store %arg15[%c0_62, %c0_63], %97 {strides = array<i32>} : memref<2x1xf32, #tpu.memory_space<vmem>>, vector<2x1xf32>,
    } else {
    }
    %c0 = arith.constant 0 : index
    %c0_1 = arith.constant 0 : index
    %3 = vector.load %arg13[%c0, %c0_1] : memref<2x128xbf16, #tpu.memory_space<vmem>>, vector<2x128xbf16>
    %c0_2 = arith.constant 0 : index
    %c0_3 = arith.constant 0 : index
    %c0_4 = arith.constant 0 : index
    %4 = vector.load %arg8[%c0_2, %c0_3, %c0_4] : memref<1x128x2048xbf16, #tpu.memory_space<vmem>>, vector<1x128x2048xbf16>
    %5 = vector.shape_cast %4 : vector<1x128x2048xbf16> to vector<128x2048xbf16>
    %cst = arith.constant dense<0.000000e+00> : vector<2x2048xf32>
    %6 = tpu.matmul %3, %5, %cst {dimension_numbers = #tpu.dot_dimension_numbers<[1], [0], [0], [1], [0, 0, 1, 1], [], []>} : vector<2x128xbf16>, vector<128x2048xbf16>, vector<2x2048xf32> -> vector<2x2048xf32>
    %c0_5 = arith.constant 0 : index
    %c0_6 = arith.constant 0 : index
    %7 = vector.load %arg9[%c0_5, %c0_6] : memref<1x2048xf32, #tpu.memory_space<vmem>>, vector<1x2048xf32>
    %8 = vector.broadcast %7 : vector<1x2048xf32> to vector<2x2048xf32>
    %9 = arith.addf %6, %8 : vector<2x2048xf32>
    %c2048_i32 = arith.constant 2048 : i32
    %10 = arith.muli %arg0, %c2048_i32 : i32
    %11 = tpu.assume_multiple %10, 2048 : i32
    %c0_7 = arith.constant 0 : index
    %12 = arith.index_cast %11 : i32 to index
    %13 = vector.load %arg10[%c0_7, %12] : memref<2x6144xf32, #tpu.memory_space<vmem>>, vector<2x2048xf32>
    tpu.vector_store %arg10[%c0_7, %12], %9 {strides = array<i32>} : memref<2x6144xf32, #tpu.memory_space<vmem>>, vector<2x2048xf32>,
    %c0_8 = arith.constant 0 : index
    %c0_9 = arith.constant 0 : index
    %14 = vector.load %arg14[%c0_8, %c0_9] : memref<2x1xf32, #tpu.memory_space<vmem>>, vector<2x1xf32>
    %cst_10 = arith.constant dense<0xFF800000> : vector<2xf32>
    %15 = vector.multi_reduction <maximumf>, %9, %cst_10 [1] : vector<2x2048xf32> to vector<2xf32>
    %16 = vector.shape_cast %15 : vector<2xf32> to vector<2x1xf32>
    %17 = arith.maximumf %14, %16 : vector<2x1xf32>
    %c0_11 = arith.constant 0 : index
    %c0_12 = arith.constant 0 : index
    %18 = vector.load %arg15[%c0_11, %c0_12] : memref<2x1xf32, #tpu.memory_space<vmem>>, vector<2x1xf32>
    %19 = arith.subf %14, %17 : vector<2x1xf32>
    %20 = math.exp %19 : vector<2x1xf32>
    %21 = arith.mulf %18, %20 : vector<2x1xf32>
    %22 = vector.broadcast %17 : vector<2x1xf32> to vector<2x2048xf32>
    %23 = arith.subf %9, %22 : vector<2x2048xf32>
    %24 = math.exp %23 : vector<2x2048xf32>
    %cst_13 = arith.constant dense<0.000000e+00> : vector<2xf32>
    %25 = vector.multi_reduction <add>, %24, %cst_13 [1] : vector<2x2048xf32> to vector<2xf32>
    %26 = vector.shape_cast %25 : vector<2xf32> to vector<2x1xf32>
    %27 = arith.addf %21, %26 : vector<2x1xf32>
    %c0_14 = arith.constant 0 : index
    %c0_15 = arith.constant 0 : index
    %28 = vector.load %arg15[%c0_14, %c0_15] : memref<2x1xf32, #tpu.memory_space<vmem>>, vector<2x1xf32>
    tpu.vector_store %arg15[%c0_14, %c0_15], %27 {strides = array<i32>} : memref<2x1xf32, #tpu.memory_space<vmem>>, vector<2x1xf32>,
    %c0_16 = arith.constant 0 : index
    %c0_17 = arith.constant 0 : index
    %29 = vector.load %arg14[%c0_16, %c0_17] : memref<2x1xf32, #tpu.memory_space<vmem>>, vector<2x1xf32>
    tpu.vector_store %arg14[%c0_16, %c0_17], %17 {strides = array<i32>} : memref<2x1xf32, #tpu.memory_space<vmem>>, vector<2x1xf32>,
    %c2_i32 = arith.constant 2 : i32
    %30 = arith.cmpi eq, %arg0, %c2_i32 : i32
    %31 = arith.extui %30 : i1 to i32
    %c0_i32_18 = arith.constant 0 : i32
    %32 = arith.cmpi ne, %31, %c0_i32_18 : i32
    scf.if %32 {
      %c0_19 = arith.constant 0 : index
      %c0_20 = arith.constant 0 : index
      %33 = vector.load %arg10[%c0_19, %c0_20] : memref<2x6144xf32, #tpu.memory_space<vmem>>, vector<2x6144xf32>
      %c0_21 = arith.constant 0 : index
      %c0_22 = arith.constant 0 : index
      %34 = vector.load %arg14[%c0_21, %c0_22] : memref<2x1xf32, #tpu.memory_space<vmem>>, vector<2x1xf32>
      %c0_23 = arith.constant 0 : index
      %c0_24 = arith.constant 0 : index
      %35 = vector.load %arg15[%c0_23, %c0_24] : memref<2x1xf32, #tpu.memory_space<vmem>>, vector<2x1xf32>
      %36 = math.log %35 : vector<2x1xf32>
      %37 = arith.addf %34, %36 : vector<2x1xf32>
      %38 = vector.broadcast %37 : vector<2x1xf32> to vector<2x6144xf32>
      %39 = arith.subf %33, %38 : vector<2x6144xf32>
      %c0_25 = arith.constant 0 : index
      %c0_26 = arith.constant 0 : index
      %40 = vector.load %arg10[%c0_25, %c0_26] : memref<2x6144xf32, #tpu.memory_space<vmem>>, vector<2x6144xf32>
      tpu.vector_store %arg10[%c0_25, %c0_26], %39 {strides = array<i32>} : memref<2x6144xf32, #tpu.memory_space<vmem>>, vector<2x6144xf32>,
    } else {
    }
    return
  }
  func.func @transform_1(%arg0: i32, %arg1: memref<2xi32, #tpu.memory_space<smem>>) -> (i32, i32) {
    %c0_i32 = arith.constant 0 : i32
    %c0_i32_0 = arith.constant 0 : i32
    %c0_i32_1 = arith.constant 0 : i32
    return %c0_i32, %c0_i32_0 : i32, i32
  }
  func.func @transform_2(%arg0: i32, %arg1: memref<2xi32, #tpu.memory_space<smem>>) -> (i32, i32) {
    %c0_i32 = arith.constant 0 : i32
    %c0_i32_0 = arith.constant 0 : i32
    %c0_i32_1 = arith.constant 0 : i32
    return %c0_i32, %c0_i32_0 : i32, i32
  }
  func.func @transform_3(%arg0: i32, %arg1: memref<2xi32, #tpu.memory_space<smem>>) -> (i32, i32) {
    %c0_i32 = arith.constant 0 : i32
    %c0_i32_0 = arith.constant 0 : i32
    %c0_i32_1 = arith.constant 0 : i32
    return %c0_i32, %c0_i32_0 : i32, i32
  }
  func.func @transform_4(%arg0: i32, %arg1: memref<2xi32, #tpu.memory_space<smem>>) -> (i32, i32) {
    %c0_i32 = arith.constant 0 : i32
    %c0_i32_0 = arith.constant 0 : i32
    %c0_i32_1 = arith.constant 0 : i32
    return %c0_i32, %c0_i32_0 : i32, i32
  }
  func.func @transform_5(%arg0: i32, %arg1: memref<2xi32, #tpu.memory_space<smem>>) -> (i32, i32) {
    %c0_i32 = arith.constant 0 : i32
    %c0_i32_0 = arith.constant 0 : i32
    %c0_i32_1 = arith.constant 0 : i32
    return %c0_i32, %c0_i32_0 : i32, i32
  }
  func.func @transform_6(%arg0: i32, %arg1: memref<2xi32, #tpu.memory_space<smem>>) -> (i32, i32, i32) {
    %c0_i32 = arith.constant 0 : i32
    %c0_i32_0 = arith.constant 0 : i32
    %c0_i32_1 = arith.constant 0 : i32
    return %arg0, %c0_i32, %c0_i32_0 : i32, i32, i32
  }
  func.func @transform_7(%arg0: i32, %arg1: memref<2xi32, #tpu.memory_space<smem>>) -> (i32, i32) {
    %c0_i32 = arith.constant 0 : i32
    %c0_i32_0 = arith.constant 0 : i32
    return %c0_i32, %arg0 : i32, i32
  }
  func.func @transform_8(%arg0: i32, %arg1: memref<2xi32, #tpu.memory_space<smem>>) -> (i32, i32) {
    %c0_i32 = arith.constant 0 : i32
    %c0_i32_0 = arith.constant 0 : i32
    %c0_i32_1 = arith.constant 0 : i32
    return %c0_i32, %c0_i32_0 : i32, i32
  }
  func.func @transform_9(%arg0: i32, %arg1: memref<2xi32, #tpu.memory_space<smem>>) -> (i32, i32) {
    %c0_i32 = arith.constant 0 : i32
    %c0_i32_0 = arith.constant 0 : i32
    %c0_i32_1 = arith.constant 0 : i32
    return %c0_i32, %c0_i32_0 : i32, i32
  }
}

</mosaic_0001>

<llo_original>
// kernel: tpu_custom_call.1
$region0: #{tpu_custom_call.1}
  #allocation0 [shape = 'u32[]', space=smem, size = 0x4, offset = 0x4, fixed_abs, tag = 'smem constant byte address 0x4 - core index']
  #allocation1 [shape = 'u32[144,128]{1,0:T(1,128)}', space=vmem, size = 0x12000, scoped, tag = 'internal scratch']
  #allocation2 [shape = 'f32[2,128]{1,0:T(2,128)}', space=vmem, size = 0x400, scoped, tag = 'scratch operand']
  #allocation3 [shape = 'bf16[2,128]{1,0:T(2,128)(2,1)}', space=vmem, size = 0x200, scoped, tag = 'scratch operand']
  #allocation4 [shape = 'f32[2,1]{1,0:T(2,128)}', space=vmem, size = 0x400, scoped, tag = 'scratch operand']
  #allocation5 [shape = 'f32[2,1]{1,0:T(2,128)}', space=vmem, size = 0x400, scoped, tag = 'scratch operand']
  #allocation6 [shape = 's32[2]{0}', space=sflag, size = 0x8, scoped, tag = 'scratch operand']
  #allocation7 [shape = 's32[1]{0}', space=sflag, size = 0x4, scoped, tag = 'scoped memory for tpu_custom_call.1']
  #allocation8 [shape = 'u8[512]{0}', space=smem, size = 0x200, scoped, tag = 'prefetched SMEM operand 0']
  #allocation24 [shape = 's32[]', space=sflag, size = 0x4, offset = 0, fixed_abs, tag = 'sflag constant byte address 0x0 - dummy sync flag']
  #allocation25 [shape = 's32[]', space=sflag, size = 0x4, offset = 0, fixed_abs, tag = 'sflag constant byte address 0x0 - dummy sync flag']
  #allocation26 [shape = 'u32[]', space=smem, size = 0x4, offset = 0x44, fixed_abs, tag = 'smem constant byte address 0x44 - assertion arg 0']
  #allocation27 [shape = 'u32[]', space=smem, size = 0x4, offset = 0x48, fixed_abs, tag = 'smem constant byte address 0x48 - assertion arg 1']
  #allocation28 [shape = 's32[]', space=sflag, size = 0x4, offset = 0, fixed_abs, tag = 'sflag constant byte address 0x0 - dummy sync flag']
  #allocation29 [shape = 's32[]', space=sflag, size = 0x4, offset = 0, fixed_abs, tag = 'sflag constant byte address 0x0 - dummy sync flag']
  %s0 = inlined_call_operand.hbm [shape: s32[2], index: 0, kind: input, shape index: {}]
  %s1 = inlined_call_operand.hbm [shape: f32[5000,128], index: 1, kind: input, shape index: {}]
  %s2 = inlined_call_operand.hbm [shape: f32[2,128], index: 2, kind: input, shape index: {}]
  %s3 = inlined_call_operand.hbm [shape: f32[2,128], index: 3, kind: input, shape index: {}]
  %s4 = inlined_call_operand.hbm [shape: bf16[128,512], index: 4, kind: input, shape index: {}]
  %s5 = inlined_call_operand.hbm [shape: bf16[128,512], index: 5, kind: input, shape index: {}]
  %s6 = inlined_call_operand.hbm [shape: f32[1,512], index: 6, kind: input, shape index: {}]
  %s7 = inlined_call_operand.hbm [shape: bf16[3,128,2048], index: 7, kind: input, shape index: {}]
  %s8 = inlined_call_operand.hbm [shape: f32[1,6144], index: 8, kind: input, shape index: {}]
  %s9 = inlined_call_operand.hbm [shape: f32[2,6144], index: 9, kind: output, shape index: {0}]
  %s10 = inlined_call_operand.hbm [shape: f32[2,256], index: 10, kind: output, shape index: {1}]
  %11 = xla_tuple %s9, %s10
  %s12 = sld [smem:[#allocation0]]
  $region113: #{tpu_custom_call.1} parent=0
    _
  %s14 = ssub.s32 1, %s12
  %s15 = scalar_select 0, %s14, %s12
  %17 = dma.hbm_to_smem %s0, 16, [#allocation8], [#allocation7]
  %18 = dma.done [#allocation7], 16
  %19 = sfence
  $region1: #{tpu_custom_call.1} parent=0
    #allocation9 [shape = 'u8[1024]{0}', space=vmem, size = 0x400, scoped, tag = 'input window, operand 2, single buffered']
    #allocation10 [shape = 's32[2]{0}', space=sflag, size = 0x8, scoped, tag = 'scoped memory for tpu_custom_call.1']
    #allocation11 [shape = 's32[2]{0}', space=sflag, size = 0x8, scoped, tag = 'scoped memory for tpu_custom_call.1']
    #allocation12 [shape = 'u8[1024]{0}', space=vmem, size = 0x400, scoped, tag = 'input window, operand 3, single buffered']
    #allocation13 [shape = 's32[1]{0}', space=sflag, size = 0x4, scoped, tag = 'scoped memory for tpu_custom_call.1']
    #allocation14 [shape = 'u8[131072]{0}', space=vmem, size = 0x20000, scoped, tag = 'input window, operand 4, single buffered']
    #allocation15 [shape = 'u8[131072]{0}', space=vmem, size = 0x20000, scoped, tag = 'input window, operand 5, single buffered']
    #allocation16 [shape = 's32[1]{0}', space=sflag, size = 0x4, scoped, tag = 'scoped memory for tpu_custom_call.1']
    #allocation17 [shape = 'u8[2048]{0}', space=vmem, size = 0x800, scoped, tag = 'input window, operand 6, single buffered']
    #allocation18 [shape = 'u8[1048576]{0}', space=vmem, size = 0x100000, scoped, tag = 'input window, operand 7']
    #allocation19 [shape = 's32[2]{0}', space=sflag, size = 0x8, scoped, tag = 'scoped memory for tpu_custom_call.1']
    #allocation20 [shape = 'u8[16384]{0}', space=vmem, size = 0x4000, scoped, tag = 'input window, operand 8']
    #allocation21 [shape = 'u8[49152]{0}', space=vmem, size = 0xc000, scoped, tag = 'output window, operand 0, single buffered']
    #allocation22 [shape = 'u8[2048]{0}', space=vmem, size = 0x800, scoped, tag = 'output window, operand 1, single buffered']
    #allocation23 [shape = 's32[1]{0}', space=sflag, size = 0x4, scoped, tag = 'scoped memory for tpu_custom_call.1']
    %20 = vsyncpa [#allocation10], 0
    %21 = vsyncpa [#allocation13], 0
    %22 = vsyncpa [#allocation16], 0
    %23 = vsyncpa [#allocation19], 0
    %s24 = scalar_lea.sflag [#allocation19], 1
    %25 = vsyncpa %s24, 0
    %26 = vsyncpa [#allocation11], 0
    %27 = vsyncpa [#allocation23], 0
    loop: start=0, step=1, limit=5
    $region2: #{tpu_custom_call.1} parent=1 // loop_pre_header
      _
    $region3: #{tpu_custom_call.1} parent=1 // loop_header
      %s29 = sphi 0, %s33
      %p30 = scmp.ge.s32.totalorder %s29, 5
      %s37 = sphi 0, %s37
      %s39 = sphi 0, %s37
      %s40 = sphi 0, %s39
      %s54 = sphi 0, %s40
      %s58 = sphi 0, %s58
      %s60 = sphi 0, %s58
      %s61 = sphi 0, %s60
      %s75 = sphi 0, %s61
      %s79 = sphi 0, %s79
      %s81 = sphi 0, %s79
      %s82 = sphi 0, %s81
      %s96 = sphi 0, %s82
      %s100 = sphi 0, %s100
      %s102 = sphi 0, %s100
      %s103 = sphi 0, %s102
      %s117 = sphi 0, %s103
      %s121 = sphi 0, %s121
      %s123 = sphi 0, %s121
      %s124 = sphi 0, %s123
      %s138 = sphi 0, %s124
      %s144 = sphi 0, %s146
      %s147 = sphi 0, %s144
      %s148 = sphi 0, %s147
      %s164 = sphi 0, %s148
      %s170 = sphi 0, %s172
      %s173 = sphi 0, %s170
      %s174 = sphi 0, %s173
      %s190 = sphi 0, %s174
      %s194 = sphi 0, %s194
      %s196 = sphi 0, %s194
      %s197 = sphi 0, %s196
      %s211 = sphi 0, %s197
      %s215 = sphi 0, %s215
      %s217 = sphi 0, %s215
      %s218 = sphi 0, %s217
      %s232 = sphi 0, %s218
    $region4: #{tpu_custom_call.1} parent=1 // loop_header_branch
      %32 = sbr.rel (%p30) target = $region8
    $region5: #{tpu_custom_call.1} parent=1 // loop_body
      %s34 = ssub.s32 %s29, 1
      %s35 = ssub.s32 %s29, 2
      %s36 = sadd.s32 %s29, 1
      %s38 = sadd.s32 %s37, 1
      %p41 = scmp.eq.s32.totalorder %s29, 2
      %p42 = scmp.ne.s32.totalorder %s37, %s39
      %p43 = scmp.eq.s32.totalorder %s29, 0
      %p44 = por %p42, %p43
      %p45 = scmp.ne.s32.totalorder %s37, %s39
      %p46 = scmp.eq.s32.totalorder %s34, 2
      %p47 = por %p45, %p46
      %p48 = scmp.ne.s32.totalorder %s39, %s40
      %p49 = scmp.eq.s32.totalorder %s34, 0
      %p50 = por %p48, %p49
      %p51 = scmp.ne.s32.totalorder %s39, %s40
      %p52 = scmp.eq.s32.totalorder %s35, 2
      %p53 = por %p51, %p52
      %p55 = scmp.ne.s32.totalorder %s40, %s54
      %p56 = scmp.eq.s32.totalorder %s35, 0
      %p57 = por %p55, %p56
      %s59 = sadd.s32 %s58, 1
      %p62 = scmp.eq.s32.totalorder %s29, 2
      %p63 = scmp.ne.s32.totalorder %s58, %s60
      %p64 = scmp.eq.s32.totalorder %s29, 0
      %p65 = por %p63, %p64
      %p66 = scmp.ne.s32.totalorder %s58, %s60
      %p67 = scmp.eq.s32.totalorder %s34, 2
      %p68 = por %p66, %p67
      %p69 = scmp.ne.s32.totalorder %s60, %s61
      %p70 = scmp.eq.s32.totalorder %s34, 0
      %p71 = por %p69, %p70
      %p72 = scmp.ne.s32.totalorder %s60, %s61
      %p73 = scmp.eq.s32.totalorder %s35, 2
      %p74 = por %p72, %p73
      %p76 = scmp.ne.s32.totalorder %s61, %s75
      %p77 = scmp.eq.s32.totalorder %s35, 0
      %p78 = por %p76, %p77
      %s80 = sadd.s32 %s79, 1
      %p83 = scmp.eq.s32.totalorder %s29, 2
      %p84 = scmp.ne.s32.totalorder %s79, %s81
      %p85 = scmp.eq.s32.totalorder %s29, 0
      %p86 = por %p84, %p85
      %p87 = scmp.ne.s32.totalorder %s79, %s81
      %p88 = scmp.eq.s32.totalorder %s34, 2
      %p89 = por %p87, %p88
      %p90 = scmp.ne.s32.totalorder %s81, %s82
      %p91 = scmp.eq.s32.totalorder %s34, 0
      %p92 = por %p90, %p91
      %p93 = scmp.ne.s32.totalorder %s81, %s82
      %p94 = scmp.eq.s32.totalorder %s35, 2
      %p95 = por %p93, %p94
      %p97 = scmp.ne.s32.totalorder %s82, %s96
      %p98 = scmp.eq.s32.totalorder %s35, 0
      %p99 = por %p97, %p98
      %s101 = sadd.s32 %s100, 1
      %p104 = scmp.eq.s32.totalorder %s29, 2
      %p105 = scmp.ne.s32.totalorder %s100, %s102
      %p106 = scmp.eq.s32.totalorder %s29, 0
      %p107 = por %p105, %p106
      %p108 = scmp.ne.s32.totalorder %s100, %s102
      %p109 = scmp.eq.s32.totalorder %s34, 2
      %p110 = por %p108, %p109
      %p111 = scmp.ne.s32.totalorder %s102, %s103
      %p112 = scmp.eq.s32.totalorder %s34, 0
      %p113 = por %p111, %p112
      %p114 = scmp.ne.s32.totalorder %s102, %s103
      %p115 = scmp.eq.s32.totalorder %s35, 2
      %p116 = por %p114, %p115
      %p118 = scmp.ne.s32.totalorder %s103, %s117
      %p119 = scmp.eq.s32.totalorder %s35, 0
      %p120 = por %p118, %p119
      %s122 = sadd.s32 %s121, 1
      %p125 = scmp.eq.s32.totalorder %s29, 2
      %p126 = scmp.ne.s32.totalorder %s121, %s123
      %p127 = scmp.eq.s32.totalorder %s29, 0
      %p128 = por %p126, %p127
      %p129 = scmp.ne.s32.totalorder %s121, %s123
      %p130 = scmp.eq.s32.totalorder %s34, 2
      %p131 = por %p129, %p130
      %p132 = scmp.ne.s32.totalorder %s123, %s124
      %p133 = scmp.eq.s32.totalorder %s34, 0
      %p134 = por %p132, %p133
      %p135 = scmp.ne.s32.totalorder %s123, %s124
      %p136 = scmp.eq.s32.totalorder %s35, 2
      %p137 = por %p135, %p136
      %p139 = scmp.ne.s32.totalorder %s124, %s138
      %p140 = scmp.eq.s32.totalorder %s35, 0
      %p141 = por %p139, %p140
      %s142 = ssub.s32 %s29, %s36
      %p143 = scmp.eq.s32.totalorder %s142, 0
      %s145 = sadd.s32 %s144, 1
      %s146 = scalar_select %p143, %s144, %s145
      %p149 = pneg %p143
      %p150 = scmp.eq.s32.totalorder %s29, 2
      %p151 = por %p149, %p150
      %p152 = scmp.ne.s32.totalorder %s144, %s147
      %p153 = scmp.eq.s32.totalorder %s29, 0
      %p154 = por %p152, %p153
      %p155 = scmp.ne.s32.totalorder %s144, %s147
      %p156 = scmp.eq.s32.totalorder %s34, 2
      %p157 = por %p155, %p156
      %p158 = scmp.ne.s32.totalorder %s147, %s148
      %p159 = scmp.eq.s32.totalorder %s34, 0
      %p160 = por %p158, %p159
      %p161 = scmp.ne.s32.totalorder %s147, %s148
      %p162 = scmp.eq.s32.totalorder %s35, 2
      %p163 = por %p161, %p162
      %p165 = scmp.ne.s32.totalorder %s148, %s164
      %p166 = scmp.eq.s32.totalorder %s35, 0
      %p167 = por %p165, %p166
      %s168 = ssub.s32 %s29, %s36
      %p169 = scmp.eq.s32.totalorder %s168, 0
      %s171 = sadd.s32 %s170, 1
      %s172 = scalar_select %p169, %s170, %s171
      %p175 = pneg %p169
      %p176 = scmp.eq.s32.totalorder %s29, 2
      %p177 = por %p175, %p176
      %p178 = scmp.ne.s32.totalorder %s170, %s173
      %p179 = scmp.eq.s32.totalorder %s29, 0
      %p180 = por %p178, %p179
      %p181 = scmp.ne.s32.totalorder %s170, %s173
      %p182 = scmp.eq.s32.totalorder %s34, 2
      %p183 = por %p181, %p182
      %p184 = scmp.ne.s32.totalorder %s173, %s174
      %p185 = scmp.eq.s32.totalorder %s34, 0
      %p186 = por %p184, %p185
      %p187 = scmp.ne.s32.totalorder %s173, %s174
      %p188 = scmp.eq.s32.totalorder %s35, 2
      %p189 = por %p187, %p188
      %p191 = scmp.ne.s32.totalorder %s174, %s190
      %p192 = scmp.eq.s32.totalorder %s35, 0
      %p193 = por %p191, %p192
      %s195 = sadd.s32 %s194, 1
      %p198 = scmp.eq.s32.totalorder %s29, 2
      %p199 = scmp.ne.s32.totalorder %s194, %s196
      %p200 = scmp.eq.s32.totalorder %s29, 0
      %p201 = por %p199, %p200
      %p202 = scmp.ne.s32.totalorder %s194, %s196
      %p203 = scmp.eq.s32.totalorder %s34, 2
      %p204 = por %p202, %p203
      %p205 = scmp.ne.s32.totalorder %s196, %s197
      %p206 = scmp.eq.s32.totalorder %s34, 0
      %p207 = por %p205, %p206
      %p208 = scmp.ne.s32.totalorder %s196, %s197
      %p209 = scmp.eq.s32.totalorder %s35, 2
      %p210 = por %p208, %p209
      %p212 = scmp.ne.s32.totalorder %s197, %s211
      %p213 = scmp.eq.s32.totalorder %s35, 0
      %p214 = por %p212, %p213
      %s216 = sadd.s32 %s215, 1
      %p219 = scmp.eq.s32.totalorder %s29, 2
      %p220 = scmp.ne.s32.totalorder %s215, %s217
      %p221 = scmp.eq.s32.totalorder %s29, 0
      %p222 = por %p220, %p221
      %p223 = scmp.ne.s32.totalorder %s215, %s217
      %p224 = scmp.eq.s32.totalorder %s34, 2
      %p225 = por %p223, %p224
      %p226 = scmp.ne.s32.totalorder %s217, %s218
      %p227 = scmp.eq.s32.totalorder %s34, 0
      %p228 = por %p226, %p227
      %p229 = scmp.ne.s32.totalorder %s217, %s218
      %p230 = scmp.eq.s32.totalorder %s35, 2
      %p231 = por %p229, %p230
      %p233 = scmp.ne.s32.totalorder %s218, %s232
      %p234 = scmp.eq.s32.totalorder %s35, 0
      %p235 = por %p233, %p234
      %p236 = scmp.le.s32.totalorder 1, %s29
      %p237 = scmp.lt.s32.totalorder %s29, 4
      %p238 = pnand %p236, %p237
      %p239 = pneg %p238
      // Predicated region
      $region9: #{tpu_custom_call.1} parent=5 // pred_check
        _
      $region10: #{tpu_custom_call.1} parent=5 // pred_check_branch
        %241 = sbr.rel (%p238) target = $region12
      $region11: #{tpu_custom_call.1} parent=5 // pred_region
        %s242 = ssub.s32 %s29, 1
        // Predicated region
        $region13: #{tpu_custom_call.1} parent=11 // pred_check
          %p243 = pneg %p50
        $region14: #{tpu_custom_call.1} parent=11 // pred_check_branch
          %245 = sbr.rel (%p243) target = $region16
        $region15: #{tpu_custom_call.1} parent=11 // pred_region
          %s247 = ssub.s32 32, 32
          %248 = vsyncadd [#allocation10], %s247
          %s250 = sshll.u32 [#allocation9], 4
          %s251 = int_to_ptr.vmem [resolvable:$true] %s250
          %253 = dma.hbm_to_vmem [thread:$0]  %s2, 32, %s251, [#allocation10]
        $region16: #{tpu_custom_call.1} parent=11 // pred_fallthru
          _
        // Predicated region
        $region17: #{tpu_custom_call.1} parent=11 // pred_check
          %p254 = pneg %p71
        $region18: #{tpu_custom_call.1} parent=11 // pred_check_branch
          %256 = sbr.rel (%p254) target = $region20
        $region19: #{tpu_custom_call.1} parent=11 // pred_region
          %s258 = ssub.s32 32, 32
          %259 = vsyncadd [#allocation13], %s258
          %s261 = sshll.u32 [#allocation12], 4
          %s262 = int_to_ptr.vmem [resolvable:$true] %s261
          %264 = dma.hbm_to_vmem [thread:$0]  %s3, 32, %s262, [#allocation13]
        $region20: #{tpu_custom_call.1} parent=11 // pred_fallthru
          _
        // Predicated region
        $region21: #{tpu_custom_call.1} parent=11 // pred_check
          %p265 = pneg %p92
        $region22: #{tpu_custom_call.1} parent=11 // pred_check_branch
          %267 = sbr.rel (%p265) target = $region24
        $region23: #{tpu_custom_call.1} parent=11 // pred_region
          %s269 = ssub.s32 4096, 4096
          %270 = vsyncadd [#allocation13], %s269
          %s271 = sshll.u32 [#allocation14], 4
          %s272 = int_to_ptr.vmem [resolvable:$true] %s271
          %277 = dma.hbm_to_vmem [thread:$0]  %s4, 4096, %s272, [#allocation13], 256, 256, 16
        $region24: #{tpu_custom_call.1} parent=11 // pred_fallthru
          _
        // Predicated region
        $region25: #{tpu_custom_call.1} parent=11 // pred_check
          %p278 = pneg %p113
        $region26: #{tpu_custom_call.1} parent=11 // pred_check_branch
          %280 = sbr.rel (%p278) target = $region28
        $region27: #{tpu_custom_call.1} parent=11 // pred_region
          %s282 = ssub.s32 4096, 4096
          %283 = vsyncadd [#allocation16], %s282
          %s284 = sshll.u32 [#allocation15], 4
          %s285 = int_to_ptr.vmem [resolvable:$true] %s284
          %290 = dma.hbm_to_vmem [thread:$0]  %s5, 4096, %s285, [#allocation16], 256, 256, 16
        $region28: #{tpu_custom_call.1} parent=11 // pred_fallthru
          _
        // Predicated region
        $region29: #{tpu_custom_call.1} parent=11 // pred_check
          %p291 = pneg %p134
        $region30: #{tpu_custom_call.1} parent=11 // pred_check_branch
          %293 = sbr.rel (%p291) target = $region32
        $region31: #{tpu_custom_call.1} parent=11 // pred_region
          %s295 = ssub.s32 64, 64
          %296 = vsyncadd [#allocation16], %s295
          %s298 = sshll.u32 [#allocation17], 4
          %s299 = int_to_ptr.vmem [resolvable:$true] %s298
          %301 = dma.hbm_to_vmem [thread:$0]  %s6, 64, %s299, [#allocation16]
        $region32: #{tpu_custom_call.1} parent=11 // pred_fallthru
          _
      $region12: #{tpu_custom_call.1} parent=5 // pred_fallthru
        _
      %p302 = scmp.lt.s32.totalorder %s29, 3
      // Predicated region
      $region33: #{tpu_custom_call.1} parent=5 // pred_check
        %p303 = pneg %p302
      $region34: #{tpu_custom_call.1} parent=5 // pred_check_branch
        %305 = sbr.rel (%p303) target = $region36
      $region35: #{tpu_custom_call.1} parent=5 // pred_region
        // Predicated region
        $region37: #{tpu_custom_call.1} parent=35 // pred_check
          %p306 = pneg %p154
        $region38: #{tpu_custom_call.1} parent=35 // pred_check_branch
          %308 = sbr.rel (%p306) target = $region40
        $region39: #{tpu_custom_call.1} parent=35 // pred_region
          %s309 = sand.u32 %s29, 1
          %s310 = scalar_lea.sflag [#allocation19], %s309
          %s311 = sand.u32 %s144, 1
          %s312 = smul.addr %s311, 1024
          %s313 = scalar_lea.vmem [#allocation18], %s312
          %s315 = ssub.s32 16384, 16384
          %316 = vsyncadd %s310, %s315
          %s317 = smul.addr %s29, 256
          %s318 = smul.addr %s317, 64
          %s319 = scalar_lea.hbm %s7, %s318
          %s320 = sshll.u32 %s313, 4
          %s321 = int_to_ptr.vmem [resolvable:$true] %s320
          %326 = dma.hbm_to_vmem [thread:$0]  %s319, 16384, %s321, %s310, 1024, 1024, 64
        $region40: #{tpu_custom_call.1} parent=35 // pred_fallthru
          _
        // Predicated region
        $region41: #{tpu_custom_call.1} parent=35 // pred_check
          %p327 = pneg %p180
        $region42: #{tpu_custom_call.1} parent=35 // pred_check_branch
          %329 = sbr.rel (%p327) target = $region44
        $region43: #{tpu_custom_call.1} parent=35 // pred_region
          %s330 = sand.u32 %s29, 1
          %s331 = scalar_lea.sflag [#allocation19], %s330
          %s332 = sand.u32 %s170, 1
          %s333 = smul.addr %s332, 16
          %s334 = scalar_lea.vmem [#allocation20], %s333
          %s335 = smul.u32 16, %s29
          %s337 = ssub.s32 256, 256
          %338 = vsyncadd %s331, %s337
          %s339 = smul.addr %s335, 16
          %s340 = scalar_lea.hbm %s8, %s339
          %s342 = sshll.u32 %s334, 4
          %s343 = int_to_ptr.vmem [resolvable:$true] %s342
          %345 = dma.hbm_to_vmem [thread:$0]  %s340, 256, %s343, %s331
        $region44: #{tpu_custom_call.1} parent=35 // pred_fallthru
          _
      $region36: #{tpu_custom_call.1} parent=5 // pred_fallthru
        _
      %p346 = scmp.le.s32.totalorder 1, %s29
      %p347 = scmp.lt.s32.totalorder %s29, 4
      %p348 = pnand %p346, %p347
      %p349 = pneg %p348
      // Predicated region
      $region45: #{tpu_custom_call.1} parent=5 // pred_check
        _
      $region46: #{tpu_custom_call.1} parent=5 // pred_check_branch
        %351 = sbr.rel (%p348) target = $region48
      $region47: #{tpu_custom_call.1} parent=5 // pred_region
        %s352 = ssub.s32 %s29, 1
        // Predicated region
        $region49: #{tpu_custom_call.1} parent=47 // pred_check
          %p353 = pneg %p50
        $region50: #{tpu_custom_call.1} parent=47 // pred_check_branch
          %355 = sbr.rel (%p353) target = $region52
        $region51: #{tpu_custom_call.1} parent=47 // pred_region
          %356 = dma.done [#allocation10], 32
        $region52: #{tpu_custom_call.1} parent=47 // pred_fallthru
          _
        // Predicated region
        $region53: #{tpu_custom_call.1} parent=47 // pred_check
          %p357 = pneg %p71
        $region54: #{tpu_custom_call.1} parent=47 // pred_check_branch
          %359 = sbr.rel (%p357) target = $region56
        $region55: #{tpu_custom_call.1} parent=47 // pred_region
          %360 = dma.done [#allocation13], 32
        $region56: #{tpu_custom_call.1} parent=47 // pred_fallthru
          _
        // Predicated region
        $region57: #{tpu_custom_call.1} parent=47 // pred_check
          %p361 = pneg %p92
        $region58: #{tpu_custom_call.1} parent=47 // pred_check_branch
          %363 = sbr.rel (%p361) target = $region60
        $region59: #{tpu_custom_call.1} parent=47 // pred_region
          %364 = dma.done [#allocation13], 4096
        $region60: #{tpu_custom_call.1} parent=47 // pred_fallthru
          _
        // Predicated region
        $region61: #{tpu_custom_call.1} parent=47 // pred_check
          %p365 = pneg %p113
        $region62: #{tpu_custom_call.1} parent=47 // pred_check_branch
          %367 = sbr.rel (%p365) target = $region64
        $region63: #{tpu_custom_call.1} parent=47 // pred_region
          %368 = dma.done [#allocation16], 4096
        $region64: #{tpu_custom_call.1} parent=47 // pred_fallthru
          _
        // Predicated region
        $region65: #{tpu_custom_call.1} parent=47 // pred_check
          %p369 = pneg %p134
        $region66: #{tpu_custom_call.1} parent=47 // pred_check_branch
          %371 = sbr.rel (%p369) target = $region68
        $region67: #{tpu_custom_call.1} parent=47 // pred_region
          %372 = dma.done [#allocation16], 64
        $region68: #{tpu_custom_call.1} parent=47 // pred_fallthru
          _
        %s373 = sand.u32 %s34, 1
        %s374 = scalar_lea.sflag [#allocation19], %s373
        %s375 = sand.u32 %s147, 1
        %s376 = smul.addr %s375, 1024
        %s377 = scalar_lea.vmem [#allocation18], %s376
        // Predicated region
        $region69: #{tpu_custom_call.1} parent=47 // pred_check
          %p378 = pneg %p160
        $region70: #{tpu_custom_call.1} parent=47 // pred_check_branch
          %380 = sbr.rel (%p378) target = $region72
        $region71: #{tpu_custom_call.1} parent=47 // pred_region
          %381 = dma.done %s374, 16384
        $region72: #{tpu_custom_call.1} parent=47 // pred_fallthru
          _
        %s382 = sand.u32 %s34, 1
        %s383 = scalar_lea.sflag [#allocation19], %s382
        %s384 = sand.u32 %s173, 1
        %s385 = smul.addr %s384, 16
        %s386 = scalar_lea.vmem [#allocation20], %s385
        // Predicated region
        $region73: #{tpu_custom_call.1} parent=47 // pred_check
          %p387 = pneg %p186
        $region74: #{tpu_custom_call.1} parent=47 // pred_check_branch
          %389 = sbr.rel (%p387) target = $region76
        $region75: #{tpu_custom_call.1} parent=47 // pred_region
          %390 = dma.done %s383, 256
        $region76: #{tpu_custom_call.1} parent=47 // pred_fallthru
          _
        %p391 = pneg %p50
        %p392 = pneg %p47
        %p393 = pneg %p71
        %p394 = pneg %p68
        %p395 = pneg %p92
        %p396 = pneg %p89
        %p397 = pneg %p113
        %p398 = pneg %p110
        %p399 = pneg %p134
        %p400 = pneg %p131
        %s401 = sand.u32 %s34, 1
        %s402 = scalar_lea.sflag [#allocation19], %s401
        %s403 = sand.u32 %s147, 1
        %s404 = smul.addr %s403, 1024
        %s405 = scalar_lea.vmem [#allocation18], %s404
        %p406 = pneg %p160
        %p407 = pneg %p157
        %s408 = sand.u32 %s34, 1
        %s409 = scalar_lea.sflag [#allocation19], %s408
        %s410 = sand.u32 %s173, 1
        %s411 = smul.addr %s410, 16
        %s412 = scalar_lea.vmem [#allocation20], %s411
        %p413 = pneg %p186
        %p414 = pneg %p183
        %p415 = pneg %p207
        %p416 = pneg %p204
        %p417 = pneg %p228
        %p418 = pneg %p225
        %s419 = smul.u32 16, %s34
        %p421 = scmp.eq.s32.totalorder %s34, 0
        // Predicated region
        $region77: #{tpu_custom_call.1} parent=47 // pred_check
          %p422 = pneg %p421
        $region78: #{tpu_custom_call.1} parent=47 // pred_check_branch
          %424 = sbr.rel (%p422) target = $region80
        $region79: #{tpu_custom_call.1} parent=47 // pred_region
          %s425 = sld [smem:[#allocation8]]
          %s426 = sld [smem:[#allocation8 + $0x1]]
          %s427 = smul.addr %s425, 16
          %s428 = scalar_lea.hbm %s1, %s427
          // Predicated region
          $region81: #{tpu_custom_call.1} parent=79 // pred_check
            _
          $region82: #{tpu_custom_call.1} parent=79 // pred_check_branch
            %430 = sbr.rel target = $region84
          $region83: #{tpu_custom_call.1} parent=79 // pred_region
            %431 = sst [smem:[#allocation26]] [#allocation25]
            %432 = sst [smem:[#allocation27]] [#allocation24]
          $region84: #{tpu_custom_call.1} parent=79 // pred_fallthru
            _
          %434 = shalt.err (0)
          %s436 = sshll.u32 [#allocation2], 4
          %s437 = int_to_ptr.vmem [resolvable:$true] %s436
          %439 = dma.hbm_to_vmem [thread:$0]  %s428, 16, %s437, [#allocation6]
          %s440 = smul.addr %s426, 16
          %s441 = scalar_lea.hbm %s1, %s440
          %s442 = scalar_lea.vmem [#allocation2], 1
          %s443 = scalar_lea.sflag [#allocation6], 1
          // Predicated region
          $region85: #{tpu_custom_call.1} parent=79 // pred_check
            _
          $region86: #{tpu_custom_call.1} parent=79 // pred_check_branch
            %445 = sbr.rel target = $region88
          $region87: #{tpu_custom_call.1} parent=79 // pred_region
            %446 = sst [smem:[#allocation26]] [#allocation29]
            %447 = sst [smem:[#allocation27]] [#allocation28]
          $region88: #{tpu_custom_call.1} parent=79 // pred_fallthru
            _
          %449 = shalt.err (0)
          %s451 = sshll.u32 %s442, 4
          %s452 = int_to_ptr.vmem [resolvable:$true] %s451
          %454 = dma.hbm_to_vmem [thread:$0]  %s441, 16, %s452, %s443
          %s455 = smul.u32 1, 1
          %s456 = sshll.u32 %s455, 4
          %457 = dma.done [#allocation6], %s456
          %s458 = sshll.u32 %s455, 4
          %459 = dma.done %s443, %s458
          %v460 = vld [vmem:[#allocation2] sm:$0x3]
          %v461 = vmax.f32 %v460, 0.0
          %v462 = vpack.c.bf16 %v461, %v461
          %v463 = vld [vmem:[#allocation9] sm:$0x3]
          %v464 = vpack.c.bf16 %v463, %v463
          %v465 = vld [vmem:[#allocation14] sm:$0xff]
          %v466 = vld [vmem:[#allocation14 + $0x8] sm:$0xff]
          %v467 = vld [vmem:[#allocation14 + $0x10] sm:$0xff]
          %v468 = vld [vmem:[#allocation14 + $0x18] sm:$0xff]
          %v469 = vld [vmem:[#allocation14 + $0x20] sm:$0xff]
          %v470 = vld [vmem:[#allocation14 + $0x28] sm:$0xff]
          %v471 = vld [vmem:[#allocation14 + $0x30] sm:$0xff]
          %v472 = vld [vmem:[#allocation14 + $0x38] sm:$0xff]
          %v473 = vld [vmem:[#allocation14 + $0x40] sm:$0xff]
          %v474 = vld [vmem:[#allocation14 + $0x48] sm:$0xff]
          %v475 = vld [vmem:[#allocation14 + $0x50] sm:$0xff]
          %v476 = vld [vmem:[#allocation14 + $0x58] sm:$0xff]
          %v477 = vld [vmem:[#allocation14 + $0x60] sm:$0xff]
          %v478 = vld [vmem:[#allocation14 + $0x68] sm:$0xff]
          %v479 = vld [vmem:[#allocation14 + $0x70] sm:$0xff]
          %v480 = vld [vmem:[#allocation14 + $0x78] sm:$0xff]
          %v481 = vld [vmem:[#allocation14 + $0x80] sm:$0xff]
          %v482 = vld [vmem:[#allocation14 + $0x88] sm:$0xff]
          %v483 = vld [vmem:[#allocation14 + $0x90] sm:$0xff]
          %v484 = vld [vmem:[#allocation14 + $0x98] sm:$0xff]
          %v485 = vld [vmem:[#allocation14 + $0xa0] sm:$0xff]
          %v486 = vld [vmem:[#allocation14 + $0xa8] sm:$0xff]
          %v487 = vld [vmem:[#allocation14 + $0xb0] sm:$0xff]
          %v488 = vld [vmem:[#allocation14 + $0xb8] sm:$0xff]
          %v489 = vld [vmem:[#allocation14 + $0xc0] sm:$0xff]
          %v490 = vld [vmem:[#allocation14 + $0xc8] sm:$0xff]
          %v491 = vld [vmem:[#allocation14 + $0xd0] sm:$0xff]
          %v492 = vld [vmem:[#allocation14 + $0xd8] sm:$0xff]
          %v493 = vld [vmem:[#allocation14 + $0xe0] sm:$0xff]
          %v494 = vld [vmem:[#allocation14 + $0xe8] sm:$0xff]
          %v495 = vld [vmem:[#allocation14 + $0xf0] sm:$0xff]
          %v496 = vld [vmem:[#allocation14 + $0xf8] sm:$0xff]
          %v497 = vld [vmem:[#allocation15] sm:$0xff]
          %v498 = vld [vmem:[#allocation15 + $0x8] sm:$0xff]
          %v499 = vld [vmem:[#allocation15 + $0x10] sm:$0xff]
          %v500 = vld [vmem:[#allocation15 + $0x18] sm:$0xff]
          %v501 = vld [vmem:[#allocation15 + $0x20] sm:$0xff]
          %v502 = vld [vmem:[#allocation15 + $0x28] sm:$0xff]
          %v503 = vld [vmem:[#allocation15 + $0x30] sm:$0xff]
          %v504 = vld [vmem:[#allocation15 + $0x38] sm:$0xff]
          %v505 = vld [vmem:[#allocation15 + $0x40] sm:$0xff]
          %v506 = vld [vmem:[#allocation15 + $0x48] sm:$0xff]
          %v507 = vld [vmem:[#allocation15 + $0x50] sm:$0xff]
          %v508 = vld [vmem:[#allocation15 + $0x58] sm:$0xff]
          %v509 = vld [vmem:[#allocation15 + $0x60] sm:$0xff]
          %v510 = vld [vmem:[#allocation15 + $0x68] sm:$0xff]
          %v511 = vld [vmem:[#allocation15 + $0x70] sm:$0xff]
          %v512 = vld [vmem:[#allocation15 + $0x78] sm:$0xff]
          %v513 = vld [vmem:[#allocation15 + $0x80] sm:$0xff]
          %v514 = vld [vmem:[#allocation15 + $0x88] sm:$0xff]
          %v515 = vld [vmem:[#allocation15 + $0x90] sm:$0xff]
          %v516 = vld [vmem:[#allocation15 + $0x98] sm:$0xff]
          %v517 = vld [vmem:[#allocation15 + $0xa0] sm:$0xff]
          %v518 = vld [vmem:[#allocation15 + $0xa8] sm:$0xff]
          %v519 = vld [vmem:[#allocation15 + $0xb0] sm:$0xff]
          %v520 = vld [vmem:[#allocation15 + $0xb8] sm:$0xff]
          %v521 = vld [vmem:[#allocation15 + $0xc0] sm:$0xff]
          %v522 = vld [vmem:[#allocation15 + $0xc8] sm:$0xff]
          %v523 = vld [vmem:[#allocation15 + $0xd0] sm:$0xff]
          %v524 = vld [vmem:[#allocation15 + $0xd8] sm:$0xff]
          %v525 = vld [vmem:[#allocation15 + $0xe0] sm:$0xff]
          %v526 = vld [vmem:[#allocation15 + $0xe8] sm:$0xff]
          %v527 = vld [vmem:[#allocation15 + $0xf0] sm:$0xff]
          %v528 = vld [vmem:[#allocation15 + $0xf8] sm:$0xff]
          %v561 = vunpack.c.l.b16 %v497
          %v562 = vunpack.c.h.b16 %v497
          %v563 = vunpack.c.l.b16 %v498
          %v564 = vunpack.c.h.b16 %v498
          %v565 = vunpack.c.l.b16 %v499
          %v566 = vunpack.c.h.b16 %v499
          %v567 = vunpack.c.l.b16 %v500
          %v568 = vunpack.c.h.b16 %v500
          %v569 = vunpack.c.l.b16 %v501
          %v570 = vunpack.c.h.b16 %v501
          %v571 = vunpack.c.l.b16 %v502
          %v572 = vunpack.c.h.b16 %v502
          %v573 = vunpack.c.l.b16 %v503
          %v574 = vunpack.c.h.b16 %v503
          %v575 = vunpack.c.l.b16 %v504
          %v576 = vunpack.c.h.b16 %v504
          %v577 = vunpack.c.l.b16 %v505
          %v578 = vunpack.c.h.b16 %v505
          %v579 = vunpack.c.l.b16 %v506
          %v580 = vunpack.c.h.b16 %v506
          %v581 = vunpack.c.l.b16 %v507
          %v582 = vunpack.c.h.b16 %v507
          %v583 = vunpack.c.l.b16 %v508
          %v584 = vunpack.c.h.b16 %v508
          %v585 = vunpack.c.l.b16 %v509
          %v586 = vunpack.c.h.b16 %v509
          %v587 = vunpack.c.l.b16 %v510
          %v588 = vunpack.c.h.b16 %v510
          %v589 = vunpack.c.l.b16 %v511
          %v590 = vunpack.c.h.b16 %v511
          %v591 = vunpack.c.l.b16 %v512
          %v592 = vunpack.c.h.b16 %v512
          %v593 = vunpack.c.l.b16 %v513
          %v594 = vunpack.c.h.b16 %v513
          %v595 = vunpack.c.l.b16 %v514
          %v596 = vunpack.c.h.b16 %v514
          %v597 = vunpack.c.l.b16 %v515
          %v598 = vunpack.c.h.b16 %v515
          %v599 = vunpack.c.l.b16 %v516
          %v600 = vunpack.c.h.b16 %v516
          %v601 = vunpack.c.l.b16 %v517
          %v602 = vunpack.c.h.b16 %v517
          %v603 = vunpack.c.l.b16 %v518
          %v604 = vunpack.c.h.b16 %v518
          %v605 = vunpack.c.l.b16 %v519
          %v606 = vunpack.c.h.b16 %v519
          %v607 = vunpack.c.l.b16 %v520
          %v608 = vunpack.c.h.b16 %v520
          %v609 = vunpack.c.l.b16 %v521
          %v610 = vunpack.c.h.b16 %v521
          %v611 = vunpack.c.l.b16 %v522
          %v612 = vunpack.c.h.b16 %v522
          %v613 = vunpack.c.l.b16 %v523
          %v614 = vunpack.c.h.b16 %v523
          %v615 = vunpack.c.l.b16 %v524
          %v616 = vunpack.c.h.b16 %v524
          %v617 = vunpack.c.l.b16 %v525
          %v618 = vunpack.c.h.b16 %v525
          %v619 = vunpack.c.l.b16 %v526
          %v620 = vunpack.c.h.b16 %v526
          %v621 = vunpack.c.l.b16 %v527
          %v622 = vunpack.c.h.b16 %v527
          %v623 = vunpack.c.l.b16 %v528
          %v624 = vunpack.c.h.b16 %v528
          %v625 = vpack.c.b16 %v565, %v561
          %v626 = vpack.c.b16 %v566, %v562
          %v627 = vpack.c.b16 %v567, %v563
          %v628 = vpack.c.b16 %v568, %v564
          %v629 = vpack.c.b16 %v573, %v569
          %v630 = vpack.c.b16 %v574, %v570
          %v631 = vpack.c.b16 %v575, %v571
          %v632 = vpack.c.b16 %v576, %v572
          %v633 = vpack.c.b16 %v581, %v577
          %v634 = vpack.c.b16 %v582, %v578
          %v635 = vpack.c.b16 %v583, %v579
          %v636 = vpack.c.b16 %v584, %v580
          %v637 = vpack.c.b16 %v589, %v585
          %v638 = vpack.c.b16 %v590, %v586
          %v639 = vpack.c.b16 %v591, %v587
          %v640 = vpack.c.b16 %v592, %v588
          %v641 = vpack.c.b16 %v597, %v593
          %v642 = vpack.c.b16 %v598, %v594
          %v643 = vpack.c.b16 %v599, %v595
          %v644 = vpack.c.b16 %v600, %v596
          %v645 = vpack.c.b16 %v605, %v601
          %v646 = vpack.c.b16 %v606, %v602
          %v647 = vpack.c.b16 %v607, %v603
          %v648 = vpack.c.b16 %v608, %v604
          %v649 = vpack.c.b16 %v613, %v609
          %v650 = vpack.c.b16 %v614, %v610
          %v651 = vpack.c.b16 %v615, %v611
          %v652 = vpack.c.b16 %v616, %v612
          %v653 = vpack.c.b16 %v621, %v617
          %v654 = vpack.c.b16 %v622, %v618
          %v655 = vpack.c.b16 %v623, %v619
          %v656 = vpack.c.b16 %v624, %v620
          %689 = vmatprep.subr.bf16.mxu0 %v626
          %690 = vmatpush1.bf16.msra.mxu0 %v625
          %691 = vmatprep.subr.bf16.mxu0 %v630
          %692 = vmatpush1.bf16.msra.mxu0 %v629
          %693 = vmatprep.subr.bf16.mxu0 %v634
          %694 = vmatpush1.bf16.msra.mxu0 %v633
          %695 = vmatprep.subr.bf16.mxu0 %v638
          %696 = vmatpush1.bf16.msra.mxu0 %v637
          %697 = vmatprep.subr.bf16.mxu0 %v642
          %698 = vmatpush1.bf16.msra.mxu0 %v641
          %699 = vmatprep.subr.bf16.mxu0 %v646
          %700 = vmatpush1.bf16.msra.mxu0 %v645
          %701 = vmatprep.subr.bf16.mxu0 %v650
          %702 = vmatpush1.bf16.msra.mxu0 %v649
          %703 = vmatprep.subr.bf16.mxu0 %v654
          %704 = vmatpush1.bf16.msra.mxu0 %v653
          %705 = vmatprep.subr.bf16.mxu0 0
          %706 = vmatpush1.bf16.msra.mxu0 0
          %707 = vmatprep.subr.bf16.mxu0 0
          %708 = vmatpush1.bf16.msra.mxu0 0
          %709 = vmatprep.subr.bf16.mxu0 0
          %710 = vmatpush1.bf16.msra.mxu0 0
          %711 = vmatprep.subr.bf16.mxu0 0
          %712 = vmatpush1.bf16.msra.mxu0 0
          %713 = vmatprep.subr.bf16.mxu0 0
          %714 = vmatpush1.bf16.msra.mxu0 0
          %715 = vmatprep.subr.bf16.mxu0 0
          %716 = vmatpush1.bf16.msra.mxu0 0
          %717 = vmatprep.subr.bf16.mxu0 0
          %718 = vmatpush1.bf16.msra.mxu0 0
          %719 = vmatprep.subr.bf16.mxu0 0
          %720 = vmatpush1.bf16.msra.mxu0 0
          %721 = vmatprep.mubr.bf16.mxu0 0
          %722 = vmatmul.mubr.bf16.gmra.mrb[0].mxu0 %v464
          %v723 = vpop.f32.mrb[0].mxu0
          %v724 = vadd.f32 0.0, %v723
          %v725 = vpop.f32.mrb[0].mxu0
          %v726 = vadd.f32 0.0, %v725
          %v727 = vpop.f32.mrb[0].mxu0
          %v728 = vpop.f32.mrb[0].mxu0
          %729 = vdwg.mxu0
          %730 = vmatprep.subr.bf16.mxu0 %v628
          %731 = vmatpush1.bf16.msra.mxu0 %v627
          %732 = vmatprep.subr.bf16.mxu0 %v632
          %733 = vmatpush1.bf16.msra.mxu0 %v631
          %734 = vmatprep.subr.bf16.mxu0 %v636
          %735 = vmatpush1.bf16.msra.mxu0 %v635
          %736 = vmatprep.subr.bf16.mxu0 %v640
          %737 = vmatpush1.bf16.msra.mxu0 %v639
          %738 = vmatprep.subr.bf16.mxu0 %v644
          %739 = vmatpush1.bf16.msra.mxu0 %v643
          %740 = vmatprep.subr.bf16.mxu0 %v648
          %741 = vmatpush1.bf16.msra.mxu0 %v647
          %742 = vmatprep.subr.bf16.mxu0 %v652
          %743 = vmatpush1.bf16.msra.mxu0 %v651
          %744 = vmatprep.subr.bf16.mxu0 %v656
          %745 = vmatpush1.bf16.msra.mxu0 %v655
          %746 = vmatprep.subr.bf16.mxu0 0
          %747 = vmatpush1.bf16.msra.mxu0 0
          %748 = vmatprep.subr.bf16.mxu0 0
          %749 = vmatpush1.bf16.msra.mxu0 0
          %750 = vmatprep.subr.bf16.mxu0 0
          %751 = vmatpush1.bf16.msra.mxu0 0
          %752 = vmatprep.subr.bf16.mxu0 0
          %753 = vmatpush1.bf16.msra.mxu0 0
          %754 = vmatprep.subr.bf16.mxu0 0
          %755 = vmatpush1.bf16.msra.mxu0 0
          %756 = vmatprep.subr.bf16.mxu0 0
          %757 = vmatpush1.bf16.msra.mxu0 0
          %758 = vmatprep.subr.bf16.mxu0 0
          %759 = vmatpush1.bf16.msra.mxu0 0
          %760 = vmatprep.subr.bf16.mxu0 0
          %761 = vmatpush1.bf16.msra.mxu0 0
          %762 = vmatprep.mubr.bf16.mxu0 0
          %763 = vmatmul.mubr.bf16.gmra.mrb[0].mxu0 %v464
          %v764 = vpop.f32.mrb[0].mxu0
          %v765 = vadd.f32 0.0, %v764
          %v766 = vpop.f32.mrb[0].mxu0
          %v767 = vadd.f32 0.0, %v766
          %v768 = vpop.f32.mrb[0].mxu0
          %v769 = vpop.f32.mrb[0].mxu0
          %770 = vdwg.mxu0
          %v803 = vunpack.c.l.b16 %v465
          %v804 = vunpack.c.h.b16 %v465
          %v805 = vunpack.c.l.b16 %v466
          %v806 = vunpack.c.h.b16 %v466
          %v807 = vunpack.c.l.b16 %v467
          %v808 = vunpack.c.h.b16 %v467
          %v809 = vunpack.c.l.b16 %v468
          %v810 = vunpack.c.h.b16 %v468
          %v811 = vunpack.c.l.b16 %v469
          %v812 = vunpack.c.h.b16 %v469
          %v813 = vunpack.c.l.b16 %v470
          %v814 = vunpack.c.h.b16 %v470
          %v815 = vunpack.c.l.b16 %v471
          %v816 = vunpack.c.h.b16 %v471
          %v817 = vunpack.c.l.b16 %v472
          %v818 = vunpack.c.h.b16 %v472
          %v819 = vunpack.c.l.b16 %v473
          %v820 = vunpack.c.h.b16 %v473
          %v821 = vunpack.c.l.b16 %v474
          %v822 = vunpack.c.h.b16 %v474
          %v823 = vunpack.c.l.b16 %v475
          %v824 = vunpack.c.h.b16 %v475
          %v825 = vunpack.c.l.b16 %v476
          %v826 = vunpack.c.h.b16 %v476
          %v827 = vunpack.c.l.b16 %v477
          %v828 = vunpack.c.h.b16 %v477
          %v829 = vunpack.c.l.b16 %v478
          %v830 = vunpack.c.h.b16 %v478
          %v831 = vunpack.c.l.b16 %v479
          %v832 = vunpack.c.h.b16 %v479
          %v833 = vunpack.c.l.b16 %v480
          %v834 = vunpack.c.h.b16 %v480
          %v835 = vunpack.c.l.b16 %v481
          %v836 = vunpack.c.h.b16 %v481
          %v837 = vunpack.c.l.b16 %v482
          %v838 = vunpack.c.h.b16 %v482
          %v839 = vunpack.c.l.b16 %v483
          %v840 = vunpack.c.h.b16 %v483
          %v841 = vunpack.c.l.b16 %v484
          %v842 = vunpack.c.h.b16 %v484
          %v843 = vunpack.c.l.b16 %v485
          %v844 = vunpack.c.h.b16 %v485
          %v845 = vunpack.c.l.b16 %v486
          %v846 = vunpack.c.h.b16 %v486
          %v847 = vunpack.c.l.b16 %v487
          %v848 = vunpack.c.h.b16 %v487
          %v849 = vunpack.c.l.b16 %v488
          %v850 = vunpack.c.h.b16 %v488
          %v851 = vunpack.c.l.b16 %v489
          %v852 = vunpack.c.h.b16 %v489
          %v853 = vunpack.c.l.b16 %v490
          %v854 = vunpack.c.h.b16 %v490
          %v855 = vunpack.c.l.b16 %v491
          %v856 = vunpack.c.h.b16 %v491
          %v857 = vunpack.c.l.b16 %v492
          %v858 = vunpack.c.h.b16 %v492
          %v859 = vunpack.c.l.b16 %v493
          %v860 = vunpack.c.h.b16 %v493
          %v861 = vunpack.c.l.b16 %v494
          %v862 = vunpack.c.h.b16 %v494
          %v863 = vunpack.c.l.b16 %v495
          %v864 = vunpack.c.h.b16 %v495
          %v865 = vunpack.c.l.b16 %v496
          %v866 = vunpack.c.h.b16 %v496
          %v867 = vpack.c.b16 %v807, %v803
          %v868 = vpack.c.b16 %v808, %v804
          %v869 = vpack.c.b16 %v809, %v805
          %v870 = vpack.c.b16 %v810, %v806
          %v871 = vpack.c.b16 %v815, %v811
          %v872 = vpack.c.b16 %v816, %v812
          %v873 = vpack.c.b16 %v817, %v813
          %v874 = vpack.c.b16 %v818, %v814
          %v875 = vpack.c.b16 %v823, %v819
          %v876 = vpack.c.b16 %v824, %v820
          %v877 = vpack.c.b16 %v825, %v821
          %v878 = vpack.c.b16 %v826, %v822
          %v879 = vpack.c.b16 %v831, %v827
          %v880 = vpack.c.b16 %v832, %v828
          %v881 = vpack.c.b16 %v833, %v829
          %v882 = vpack.c.b16 %v834, %v830
          %v883 = vpack.c.b16 %v839, %v835
          %v884 = vpack.c.b16 %v840, %v836
          %v885 = vpack.c.b16 %v841, %v837
          %v886 = vpack.c.b16 %v842, %v838
          %v887 = vpack.c.b16 %v847, %v843
          %v888 = vpack.c.b16 %v848, %v844
          %v889 = vpack.c.b16 %v849, %v845
          %v890 = vpack.c.b16 %v850, %v846
          %v891 = vpack.c.b16 %v855, %v851
          %v892 = vpack.c.b16 %v856, %v852
          %v893 = vpack.c.b16 %v857, %v853
          %v894 = vpack.c.b16 %v858, %v854
          %v895 = vpack.c.b16 %v863, %v859
          %v896 = vpack.c.b16 %v864, %v860
          %v897 = vpack.c.b16 %v865, %v861
          %v898 = vpack.c.b16 %v866, %v862
          %931 = vmatprep.subr.bf16.mxu0 %v868
          %932 = vmatpush1.bf16.msra.mxu0 %v867
          %933 = vmatprep.subr.bf16.mxu0 %v872
          %934 = vmatpush1.bf16.msra.mxu0 %v871
          %935 = vmatprep.subr.bf16.mxu0 %v876
          %936 = vmatpush1.bf16.msra.mxu0 %v875
          %937 = vmatprep.subr.bf16.mxu0 %v880
          %938 = vmatpush1.bf16.msra.mxu0 %v879
          %939 = vmatprep.subr.bf16.mxu0 %v884
          %940 = vmatpush1.bf16.msra.mxu0 %v883
          %941 = vmatprep.subr.bf16.mxu0 %v888
          %942 = vmatpush1.bf16.msra.mxu0 %v887
          %943 = vmatprep.subr.bf16.mxu0 %v892
          %944 = vmatpush1.bf16.msra.mxu0 %v891
          %945 = vmatprep.subr.bf16.mxu0 %v896
          %946 = vmatpush1.bf16.msra.mxu0 %v895
          %947 = vmatprep.subr.bf16.mxu0 0
          %948 = vmatpush1.bf16.msra.mxu0 0
          %949 = vmatprep.subr.bf16.mxu0 0
          %950 = vmatpush1.bf16.msra.mxu0 0
          %951 = vmatprep.subr.bf16.mxu0 0
          %952 = vmatpush1.bf16.msra.mxu0 0
          %953 = vmatprep.subr.bf16.mxu0 0
          %954 = vmatpush1.bf16.msra.mxu0 0
          %955 = vmatprep.subr.bf16.mxu0 0
          %956 = vmatpush1.bf16.msra.mxu0 0
          %957 = vmatprep.subr.bf16.mxu0 0
          %958 = vmatpush1.bf16.msra.mxu0 0
          %959 = vmatprep.subr.bf16.mxu0 0
          %960 = vmatpush1.bf16.msra.mxu0 0
          %961 = vmatprep.subr.bf16.mxu0 0
          %962 = vmatpush1.bf16.msra.mxu0 0
          %963 = vmatprep.mubr.bf16.mxu0 0
          %964 = vmatmul.mubr.bf16.gmra.mrb[0].mxu0 %v462
          %v965 = vpop.f32.mrb[0].mxu0
          %v966 = vadd.f32 %v724, %v965
          %v967 = vpop.f32.mrb[0].mxu0
          %v968 = vadd.f32 %v726, %v967
          %v969 = vpop.f32.mrb[0].mxu0
          %v970 = vpop.f32.mrb[0].mxu0
          %971 = vdwg.mxu0
          %972 = vmatprep.subr.bf16.mxu0 %v870
          %973 = vmatpush1.bf16.msra.mxu0 %v869
          %974 = vmatprep.subr.bf16.mxu0 %v874
          %975 = vmatpush1.bf16.msra.mxu0 %v873
          %976 = vmatprep.subr.bf16.mxu0 %v878
          %977 = vmatpush1.bf16.msra.mxu0 %v877
          %978 = vmatprep.subr.bf16.mxu0 %v882
          %979 = vmatpush1.bf16.msra.mxu0 %v881
          %980 = vmatprep.subr.bf16.mxu0 %v886
          %981 = vmatpush1.bf16.msra.mxu0 %v885
          %982 = vmatprep.subr.bf16.mxu0 %v890
          %983 = vmatpush1.bf16.msra.mxu0 %v889
          %984 = vmatprep.subr.bf16.mxu0 %v894
          %985 = vmatpush1.bf16.msra.mxu0 %v893
          %986 = vmatprep.subr.bf16.mxu0 %v898
          %987 = vmatpush1.bf16.msra.mxu0 %v897
          %988 = vmatprep.subr.bf16.mxu0 0
          %989 = vmatpush1.bf16.msra.mxu0 0
          %990 = vmatprep.subr.bf16.mxu0 0
          %991 = vmatpush1.bf16.msra.mxu0 0
          %992 = vmatprep.subr.bf16.mxu0 0
          %993 = vmatpush1.bf16.msra.mxu0 0
          %994 = vmatprep.subr.bf16.mxu0 0
          %995 = vmatpush1.bf16.msra.mxu0 0
          %996 = vmatprep.subr.bf16.mxu0 0
          %997 = vmatpush1.bf16.msra.mxu0 0
          %998 = vmatprep.subr.bf16.mxu0 0
          %999 = vmatpush1.bf16.msra.mxu0 0
          %1000 = vmatprep.subr.bf16.mxu0 0
          %1001 = vmatpush1.bf16.msra.mxu0 0
          %1002 = vmatprep.subr.bf16.mxu0 0
          %1003 = vmatpush1.bf16.msra.mxu0 0
          %1004 = vmatprep.mubr.bf16.mxu0 0
          %1005 = vmatmul.mubr.bf16.gmra.mrb[0].mxu0 %v462
          %v1006 = vpop.f32.mrb[0].mxu0
          %v1007 = vadd.f32 %v765, %v1006
          %v1008 = vpop.f32.mrb[0].mxu0
          %v1009 = vadd.f32 %v767, %v1008
          %v1010 = vpop.f32.mrb[0].mxu0
          %v1011 = vpop.f32.mrb[0].mxu0
          %1012 = vdwg.mxu0
          %v1013 = vld [vmem:[#allocation17] sm:$0xf]
          %v1015 = vlaneseq
          %v1016 = vshrl.u32 %v1015, 7
          %v1017 = vsub.s32 0, %v1016
          %v1018 = vrot.slane %v1013, %v1017
          %v1019 = vlaneseq
          %v1020 = vshrl.u32 %v1019, 7
          %v1021 = vsub.s32 1, %v1020
          %v1022 = vrot.slane %v1013, %v1021
          %v1023 = vlaneseq
          %v1024 = vshrl.u32 %v1023, 7
          %v1025 = vsub.s32 2, %v1024
          %v1026 = vrot.slane %v1013, %v1025
          %v1027 = vlaneseq
          %v1028 = vshrl.u32 %v1027, 7
          %v1029 = vsub.s32 3, %v1028
          %v1030 = vrot.slane %v1013, %v1029
          %v1035 = vadd.f32 %v966, %v1018
          %v1036 = vadd.f32 %v968, %v1022
          %v1037 = vadd.f32 %v1007, %v1026
          %v1038 = vadd.f32 %v1009, %v1030
          %v1039 = vxor.u32 %v1035, 2147483648
          %v1040 = vmul.f32 %v1039, 1.442695
          %v1041 = vpow.pop %v1040
          %v1042 = vadd.f32 %v1041, 1.0
          %v1043 = vrcp.pop %v1042
          %v1044 = vmul.f32 1.0, %v1043
          %v1045 = vxor.u32 %v1036, 2147483648
          %v1046 = vmul.f32 %v1045, 1.442695
          %v1047 = vpow.pop %v1046
          %v1048 = vadd.f32 %v1047, 1.0
          %v1049 = vrcp.pop %v1048
          %v1050 = vmul.f32 1.0, %v1049
          %v1051 = vtanh.pop %v1037
          %v1052 = vxor.u32 %v1038, 2147483648
          %v1053 = vmul.f32 %v1052, 1.442695
          %v1054 = vpow.pop %v1053
          %v1055 = vadd.f32 %v1054, 1.0
          %v1056 = vrcp.pop %v1055
          %v1057 = vmul.f32 1.0, %v1056
          %v1058 = vld [vmem:[#allocation12] sm:$0x3]
          %v1059 = vmul.f32 %v1050, %v1058
          %v1060 = vmul.f32 %v1044, %v1051
          %v1061 = vadd.f32 %v1059, %v1060
          %v1062 = vtanh.pop %v1061
          %v1063 = vmul.f32 %v1057, %v1062
          %1064 = vst [vmem:[#allocation22] sm:$0x3] %v1063
          %1065 = vst [vmem:[#allocation22 + $0x2] sm:$0x3] %v1061
          %v1066 = vpack.c.bf16 %v1063, %v1063
          %1067 = vst [vmem:[#allocation3] sm:$0x1] %v1066
          %vm1068 = vcmask 1024
          %1069 = vst.msk [vmem:[#allocation4] sm:$0x3] %vm1068, -inf
          %1070 = vst.msk [vmem:[#allocation5] sm:$0x3] %vm1068, 0.0
        $region80: #{tpu_custom_call.1} parent=47 // pred_fallthru
          _
        %v1071 = vld [vmem:[#allocation3] sm:$0x1]
        %v1072 = vld [vmem:[%s377] sm:$0xff]
        %v1073 = vld [vmem:[%s377 + $0x8] sm:$0xff]
        %v1074 = vld [vmem:[%s377 + $0x10] sm:$0xff]
        %v1075 = vld [vmem:[%s377 + $0x18] sm:$0xff]
        %v1076 = vld [vmem:[%s377 + $0x20] sm:$0xff]
        %v1077 = vld [vmem:[%s377 + $0x28] sm:$0xff]
        %v1078 = vld [vmem:[%s377 + $0x30] sm:$0xff]
        %v1079 = vld [vmem:[%s377 + $0x38] sm:$0xff]
        %v1080 = vld [vmem:[%s377 + $0x40] sm:$0xff]
        %v1081 = vld [vmem:[%s377 + $0x48] sm:$0xff]
        %v1082 = vld [vmem:[%s377 + $0x50] sm:$0xff]
        %v1083 = vld [vmem:[%s377 + $0x58] sm:$0xff]
        %v1084 = vld [vmem:[%s377 + $0x60] sm:$0xff]
        %v1085 = vld [vmem:[%s377 + $0x68] sm:$0xff]
        %v1086 = vld [vmem:[%s377 + $0x70] sm:$0xff]
        %v1087 = vld [vmem:[%s377 + $0x78] sm:$0xff]
        %v1088 = vld [vmem:[%s377 + $0x80] sm:$0xff]
        %v1089 = vld [vmem:[%s377 + $0x88] sm:$0xff]
        %v1090 = vld [vmem:[%s377 + $0x90] sm:$0xff]
        %v1091 = vld [vmem:[%s377 + $0x98] sm:$0xff]
        %v1092 = vld [vmem:[%s377 + $0xa0] sm:$0xff]
        %v1093 = vld [vmem:[%s377 + $0xa8] sm:$0xff]
        %v1094 = vld [vmem:[%s377 + $0xb0] sm:$0xff]
        %v1095 = vld [vmem:[%s377 + $0xb8] sm:$0xff]
        %v1096 = vld [vmem:[%s377 + $0xc0] sm:$0xff]
        %v1097 = vld [vmem:[%s377 + $0xc8] sm:$0xff]
        %v1098 = vld [vmem:[%s377 + $0xd0] sm:$0xff]
        %v1099 = vld [vmem:[%s377 + $0xd8] sm:$0xff]
        %v1100 = vld [vmem:[%s377 + $0xe0] sm:$0xff]
        %v1101 = vld [vmem:[%s377 + $0xe8] sm:$0xff]
        %v1102 = vld [vmem:[%s377 + $0xf0] sm:$0xff]
        %v1103 = vld [vmem:[%s377 + $0xf8] sm:$0xff]
        %v1104 = vld [vmem:[%s377 + $0x100] sm:$0xff]
        %v1105 = vld [vmem:[%s377 + $0x108] sm:$0xff]
        %v1106 = vld [vmem:[%s377 + $0x110] sm:$0xff]
        %v1107 = vld [vmem:[%s377 + $0x118] sm:$0xff]
        %v1108 = vld [vmem:[%s377 + $0x120] sm:$0xff]
        %v1109 = vld [vmem:[%s377 + $0x128] sm:$0xff]
        %v1110 = vld [vmem:[%s377 + $0x130] sm:$0xff]
        %v1111 = vld [vmem:[%s377 + $0x138] sm:$0xff]
        %v1112 = vld [vmem:[%s377 + $0x140] sm:$0xff]
        %v1113 = vld [vmem:[%s377 + $0x148] sm:$0xff]
        %v1114 = vld [vmem:[%s377 + $0x150] sm:$0xff]
        %v1115 = vld [vmem:[%s377 + $0x158] sm:$0xff]
        %v1116 = vld [vmem:[%s377 + $0x160] sm:$0xff]
        %v1117 = vld [vmem:[%s377 + $0x168] sm:$0xff]
        %v1118 = vld [vmem:[%s377 + $0x170] sm:$0xff]
        %v1119 = vld [vmem:[%s377 + $0x178] sm:$0xff]
        %v1120 = vld [vmem:[%s377 + $0x180] sm:$0xff]
        %v1121 = vld [vmem:[%s377 + $0x188] sm:$0xff]
        %v1122 = vld [vmem:[%s377 + $0x190] sm:$0xff]
        %v1123 = vld [vmem:[%s377 + $0x198] sm:$0xff]
        %v1124 = vld [vmem:[%s377 + $0x1a0] sm:$0xff]
        %v1125 = vld [vmem:[%s377 + $0x1a8] sm:$0xff]
        %v1126 = vld [vmem:[%s377 + $0x1b0] sm:$0xff]
        %v1127 = vld [vmem:[%s377 + $0x1b8] sm:$0xff]
        %v1128 = vld [vmem:[%s377 + $0x1c0] sm:$0xff]
        %v1129 = vld [vmem:[%s377 + $0x1c8] sm:$0xff]
        %v1130 = vld [vmem:[%s377 + $0x1d0] sm:$0xff]
        %v1131 = vld [vmem:[%s377 + $0x1d8] sm:$0xff]
        %v1132 = vld [vmem:[%s377 + $0x1e0] sm:$0xff]
        %v1133 = vld [vmem:[%s377 + $0x1e8] sm:$0xff]
        %v1134 = vld [vmem:[%s377 + $0x1f0] sm:$0xff]
        %v1135 = vld [vmem:[%s377 + $0x1f8] sm:$0xff]
        %v1136 = vld [vmem:[%s377 + $0x200] sm:$0xff]
        %v1137 = vld [vmem:[%s377 + $0x208] sm:$0xff]
        %v1138 = vld [vmem:[%s377 + $0x210] sm:$0xff]
        %v1139 = vld [vmem:[%s377 + $0x218] sm:$0xff]
        %v1140 = vld [vmem:[%s377 + $0x220] sm:$0xff]
        %v1141 = vld [vmem:[%s377 + $0x228] sm:$0xff]
        %v1142 = vld [vmem:[%s377 + $0x230] sm:$0xff]
        %v1143 = vld [vmem:[%s377 + $0x238] sm:$0xff]
        %v1144 = vld [vmem:[%s377 + $0x240] sm:$0xff]
        %v1145 = vld [vmem:[%s377 + $0x248] sm:$0xff]
        %v1146 = vld [vmem:[%s377 + $0x250] sm:$0xff]
        %v1147 = vld [vmem:[%s377 + $0x258] sm:$0xff]
        %v1148 = vld [vmem:[%s377 + $0x260] sm:$0xff]
        %v1149 = vld [vmem:[%s377 + $0x268] sm:$0xff]
        %v1150 = vld [vmem:[%s377 + $0x270] sm:$0xff]
        %v1151 = vld [vmem:[%s377 + $0x278] sm:$0xff]
        %v1152 = vld [vmem:[%s377 + $0x280] sm:$0xff]
        %v1153 = vld [vmem:[%s377 + $0x288] sm:$0xff]
        %v1154 = vld [vmem:[%s377 + $0x290] sm:$0xff]
        %v1155 = vld [vmem:[%s377 + $0x298] sm:$0xff]
        %v1156 = vld [vmem:[%s377 + $0x2a0] sm:$0xff]
        %v1157 = vld [vmem:[%s377 + $0x2a8] sm:$0xff]
        %v1158 = vld [vmem:[%s377 + $0x2b0] sm:$0xff]
        %v1159 = vld [vmem:[%s377 + $0x2b8] sm:$0xff]
        %v1160 = vld [vmem:[%s377 + $0x2c0] sm:$0xff]
        %v1161 = vld [vmem:[%s377 + $0x2c8] sm:$0xff]
        %v1162 = vld [vmem:[%s377 + $0x2d0] sm:$0xff]
        %v1163 = vld [vmem:[%s377 + $0x2d8] sm:$0xff]
        %v1164 = vld [vmem:[%s377 + $0x2e0] sm:$0xff]
        %v1165 = vld [vmem:[%s377 + $0x2e8] sm:$0xff]
        %v1166 = vld [vmem:[%s377 + $0x2f0] sm:$0xff]
        %v1167 = vld [vmem:[%s377 + $0x2f8] sm:$0xff]
        %v1168 = vld [vmem:[%s377 + $0x300] sm:$0xff]
        %v1169 = vld [vmem:[%s377 + $0x308] sm:$0xff]
        %v1170 = vld [vmem:[%s377 + $0x310] sm:$0xff]
        %v1171 = vld [vmem:[%s377 + $0x318] sm:$0xff]
        %v1172 = vld [vmem:[%s377 + $0x320] sm:$0xff]
        %v1173 = vld [vmem:[%s377 + $0x328] sm:$0xff]
        %v1174 = vld [vmem:[%s377 + $0x330] sm:$0xff]
        %v1175 = vld [vmem:[%s377 + $0x338] sm:$0xff]
        %v1176 = vld [vmem:[%s377 + $0x340] sm:$0xff]
        %v1177 = vld [vmem:[%s377 + $0x348] sm:$0xff]
        %v1178 = vld [vmem:[%s377 + $0x350] sm:$0xff]
        %v1179 = vld [vmem:[%s377 + $0x358] sm:$0xff]
        %v1180 = vld [vmem:[%s377 + $0x360] sm:$0xff]
        %v1181 = vld [vmem:[%s377 + $0x368] sm:$0xff]
        %v1182 = vld [vmem:[%s377 + $0x370] sm:$0xff]
        %v1183 = vld [vmem:[%s377 + $0x378] sm:$0xff]
        %v1184 = vld [vmem:[%s377 + $0x380] sm:$0xff]
        %v1185 = vld [vmem:[%s377 + $0x388] sm:$0xff]
        %v1186 = vld [vmem:[%s377 + $0x390] sm:$0xff]
        %v1187 = vld [vmem:[%s377 + $0x398] sm:$0xff]
        %v1188 = vld [vmem:[%s377 + $0x3a0] sm:$0xff]
        %v1189 = vld [vmem:[%s377 + $0x3a8] sm:$0xff]
        %v1190 = vld [vmem:[%s377 + $0x3b0] sm:$0xff]
        %v1191 = vld [vmem:[%s377 + $0x3b8] sm:$0xff]
        %v1192 = vld [vmem:[%s377 + $0x3c0] sm:$0xff]
        %v1193 = vld [vmem:[%s377 + $0x3c8] sm:$0xff]
        %v1194 = vld [vmem:[%s377 + $0x3d0] sm:$0xff]
        %v1195 = vld [vmem:[%s377 + $0x3d8] sm:$0xff]
        %v1196 = vld [vmem:[%s377 + $0x3e0] sm:$0xff]
        %v1197 = vld [vmem:[%s377 + $0x3e8] sm:$0xff]
        %v1198 = vld [vmem:[%s377 + $0x3f0] sm:$0xff]
        %v1199 = vld [vmem:[%s377 + $0x3f8] sm:$0xff]
        %v1200 = vld [vmem:[%s386] sm:$0xff]
        %v1201 = vld [vmem:[%s386 + $0x8] sm:$0xff]
        %v1204 = vlaneseq
        %v1205 = vshrl.u32 %v1204, 7
        %v1206 = vsub.s32 0, %v1205
        %v1207 = vrot.slane %v1200, %v1206
        %v1208 = vlaneseq
        %v1209 = vshrl.u32 %v1208, 7
        %v1210 = vsub.s32 1, %v1209
        %v1211 = vrot.slane %v1200, %v1210
        %v1212 = vlaneseq
        %v1213 = vshrl.u32 %v1212, 7
        %v1214 = vsub.s32 2, %v1213
        %v1215 = vrot.slane %v1200, %v1214
        %v1216 = vlaneseq
        %v1217 = vshrl.u32 %v1216, 7
        %v1218 = vsub.s32 3, %v1217
        %v1219 = vrot.slane %v1200, %v1218
        %v1220 = vlaneseq
        %v1221 = vshrl.u32 %v1220, 7
        %v1222 = vsub.s32 4, %v1221
        %v1223 = vrot.slane %v1200, %v1222
        %v1224 = vlaneseq
        %v1225 = vshrl.u32 %v1224, 7
        %v1226 = vsub.s32 5, %v1225
        %v1227 = vrot.slane %v1200, %v1226
        %v1228 = vlaneseq
        %v1229 = vshrl.u32 %v1228, 7
        %v1230 = vsub.s32 6, %v1229
        %v1231 = vrot.slane %v1200, %v1230
        %v1232 = vlaneseq
        %v1233 = vshrl.u32 %v1232, 7
        %v1234 = vsub.s32 7, %v1233
        %v1235 = vrot.slane %v1200, %v1234
        %v1236 = vlaneseq
        %v1237 = vshrl.u32 %v1236, 7
        %v1238 = vsub.s32 0, %v1237
        %v1239 = vrot.slane %v1201, %v1238
        %v1240 = vlaneseq
        %v1241 = vshrl.u32 %v1240, 7
        %v1242 = vsub.s32 1, %v1241
        %v1243 = vrot.slane %v1201, %v1242
        %v1244 = vlaneseq
        %v1245 = vshrl.u32 %v1244, 7
        %v1246 = vsub.s32 2, %v1245
        %v1247 = vrot.slane %v1201, %v1246
        %v1248 = vlaneseq
        %v1249 = vshrl.u32 %v1248, 7
        %v1250 = vsub.s32 3, %v1249
        %v1251 = vrot.slane %v1201, %v1250
        %v1252 = vlaneseq
        %v1253 = vshrl.u32 %v1252, 7
        %v1254 = vsub.s32 4, %v1253
        %v1255 = vrot.slane %v1201, %v1254
        %v1256 = vlaneseq
        %v1257 = vshrl.u32 %v1256, 7
        %v1258 = vsub.s32 5, %v1257
        %v1259 = vrot.slane %v1201, %v1258
        %v1260 = vlaneseq
        %v1261 = vshrl.u32 %v1260, 7
        %v1262 = vsub.s32 6, %v1261
        %v1263 = vrot.slane %v1201, %v1262
        %v1264 = vlaneseq
        %v1265 = vshrl.u32 %v1264, 7
        %v1266 = vsub.s32 7, %v1265
        %v1267 = vrot.slane %v1201, %v1266
        %v1412 = vunpack.c.l.b16 %v1072
        %v1413 = vunpack.c.h.b16 %v1072
        %v1414 = vunpack.c.l.b16 %v1073
        %v1415 = vunpack.c.h.b16 %v1073
        %v1416 = vunpack.c.l.b16 %v1074
        %v1417 = vunpack.c.h.b16 %v1074
        %v1418 = vunpack.c.l.b16 %v1075
        %v1419 = vunpack.c.h.b16 %v1075
        %v1420 = vunpack.c.l.b16 %v1076
        %v1421 = vunpack.c.h.b16 %v1076
        %v1422 = vunpack.c.l.b16 %v1077
        %v1423 = vunpack.c.h.b16 %v1077
        %v1424 = vunpack.c.l.b16 %v1078
        %v1425 = vunpack.c.h.b16 %v1078
        %v1426 = vunpack.c.l.b16 %v1079
        %v1427 = vunpack.c.h.b16 %v1079
        %v1428 = vunpack.c.l.b16 %v1080
        %v1429 = vunpack.c.h.b16 %v1080
        %v1430 = vunpack.c.l.b16 %v1081
        %v1431 = vunpack.c.h.b16 %v1081
        %v1432 = vunpack.c.l.b16 %v1082
        %v1433 = vunpack.c.h.b16 %v1082
        %v1434 = vunpack.c.l.b16 %v1083
        %v1435 = vunpack.c.h.b16 %v1083
        %v1436 = vunpack.c.l.b16 %v1084
        %v1437 = vunpack.c.h.b16 %v1084
        %v1438 = vunpack.c.l.b16 %v1085
        %v1439 = vunpack.c.h.b16 %v1085
        %v1440 = vunpack.c.l.b16 %v1086
        %v1441 = vunpack.c.h.b16 %v1086
        %v1442 = vunpack.c.l.b16 %v1087
        %v1443 = vunpack.c.h.b16 %v1087
        %v1444 = vunpack.c.l.b16 %v1088
        %v1445 = vunpack.c.h.b16 %v1088
        %v1446 = vunpack.c.l.b16 %v1089
        %v1447 = vunpack.c.h.b16 %v1089
        %v1448 = vunpack.c.l.b16 %v1090
        %v1449 = vunpack.c.h.b16 %v1090
        %v1450 = vunpack.c.l.b16 %v1091
        %v1451 = vunpack.c.h.b16 %v1091
        %v1452 = vunpack.c.l.b16 %v1092
        %v1453 = vunpack.c.h.b16 %v1092
        %v1454 = vunpack.c.l.b16 %v1093
        %v1455 = vunpack.c.h.b16 %v1093
        %v1456 = vunpack.c.l.b16 %v1094
        %v1457 = vunpack.c.h.b16 %v1094
        %v1458 = vunpack.c.l.b16 %v1095
        %v1459 = vunpack.c.h.b16 %v1095
        %v1460 = vunpack.c.l.b16 %v1096
        %v1461 = vunpack.c.h.b16 %v1096
        %v1462 = vunpack.c.l.b16 %v1097
        %v1463 = vunpack.c.h.b16 %v1097
        %v1464 = vunpack.c.l.b16 %v1098
        %v1465 = vunpack.c.h.b16 %v1098
        %v1466 = vunpack.c.l.b16 %v1099
        %v1467 = vunpack.c.h.b16 %v1099
        %v1468 = vunpack.c.l.b16 %v1100
        %v1469 = vunpack.c.h.b16 %v1100
        %v1470 = vunpack.c.l.b16 %v1101
        %v1471 = vunpack.c.h.b16 %v1101
        %v1472 = vunpack.c.l.b16 %v1102
        %v1473 = vunpack.c.h.b16 %v1102
        %v1474 = vunpack.c.l.b16 %v1103
        %v1475 = vunpack.c.h.b16 %v1103
        %v1476 = vunpack.c.l.b16 %v1104
        %v1477 = vunpack.c.h.b16 %v1104
        %v1478 = vunpack.c.l.b16 %v1105
        %v1479 = vunpack.c.h.b16 %v1105
        %v1480 = vunpack.c.l.b16 %v1106
        %v1481 = vunpack.c.h.b16 %v1106
        %v1482 = vunpack.c.l.b16 %v1107
        %v1483 = vunpack.c.h.b16 %v1107
        %v1484 = vunpack.c.l.b16 %v1108
        %v1485 = vunpack.c.h.b16 %v1108
        %v1486 = vunpack.c.l.b16 %v1109
        %v1487 = vunpack.c.h.b16 %v1109
        %v1488 = vunpack.c.l.b16 %v1110
        %v1489 = vunpack.c.h.b16 %v1110
        %v1490 = vunpack.c.l.b16 %v1111
        %v1491 = vunpack.c.h.b16 %v1111
        %v1492 = vunpack.c.l.b16 %v1112
        %v1493 = vunpack.c.h.b16 %v1112
        %v1494 = vunpack.c.l.b16 %v1113
        %v1495 = vunpack.c.h.b16 %v1113
        %v1496 = vunpack.c.l.b16 %v1114
        %v1497 = vunpack.c.h.b16 %v1114
        %v1498 = vunpack.c.l.b16 %v1115
        %v1499 = vunpack.c.h.b16 %v1115
        %v1500 = vunpack.c.l.b16 %v1116
        %v1501 = vunpack.c.h.b16 %v1116
        %v1502 = vunpack.c.l.b16 %v1117
        %v1503 = vunpack.c.h.b16 %v1117
        %v1504 = vunpack.c.l.b16 %v1118
        %v1505 = vunpack.c.h.b16 %v1118
        %v1506 = vunpack.c.l.b16 %v1119
        %v1507 = vunpack.c.h.b16 %v1119
        %v1508 = vunpack.c.l.b16 %v1120
        %v1509 = vunpack.c.h.b16 %v1120
        %v1510 = vunpack.c.l.b16 %v1121
        %v1511 = vunpack.c.h.b16 %v1121
        %v1512 = vunpack.c.l.b16 %v1122
        %v1513 = vunpack.c.h.b16 %v1122
        %v1514 = vunpack.c.l.b16 %v1123
        %v1515 = vunpack.c.h.b16 %v1123
        %v1516 = vunpack.c.l.b16 %v1124
        %v1517 = vunpack.c.h.b16 %v1124
        %v1518 = vunpack.c.l.b16 %v1125
        %v1519 = vunpack.c.h.b16 %v1125
        %v1520 = vunpack.c.l.b16 %v1126
        %v1521 = vunpack.c.h.b16 %v1126
        %v1522 = vunpack.c.l.b16 %v1127
        %v1523 = vunpack.c.h.b16 %v1127
        %v1524 = vunpack.c.l.b16 %v1128
        %v1525 = vunpack.c.h.b16 %v1128
        %v1526 = vunpack.c.l.b16 %v1129
        %v1527 = vunpack.c.h.b16 %v1129
        %v1528 = vunpack.c.l.b16 %v1130
        %v1529 = vunpack.c.h.b16 %v1130
        %v1530 = vunpack.c.l.b16 %v1131
        %v1531 = vunpack.c.h.b16 %v1131
        %v1532 = vunpack.c.l.b16 %v1132
        %v1533 = vunpack.c.h.b16 %v1132
        %v1534 = vunpack.c.l.b16 %v1133
        %v1535 = vunpack.c.h.b16 %v1133
        %v1536 = vunpack.c.l.b16 %v1134
        %v1537 = vunpack.c.h.b16 %v1134
        %v1538 = vunpack.c.l.b16 %v1135
        %v1539 = vunpack.c.h.b16 %v1135
        %v1540 = vunpack.c.l.b16 %v1136
        %v1541 = vunpack.c.h.b16 %v1136
        %v1542 = vunpack.c.l.b16 %v1137
        %v1543 = vunpack.c.h.b16 %v1137
        %v1544 = vunpack.c.l.b16 %v1138
        %v1545 = vunpack.c.h.b16 %v1138
        %v1546 = vunpack.c.l.b16 %v1139
        %v1547 = vunpack.c.h.b16 %v1139
        %v1548 = vunpack.c.l.b16 %v1140
        %v1549 = vunpack.c.h.b16 %v1140
        %v1550 = vunpack.c.l.b16 %v1141
        %v1551 = vunpack.c.h.b16 %v1141
        %v1552 = vunpack.c.l.b16 %v1142
        %v1553 = vunpack.c.h.b16 %v1142
        %v1554 = vunpack.c.l.b16 %v1143
        %v1555 = vunpack.c.h.b16 %v1143
        %v1556 = vunpack.c.l.b16 %v1144
        %v1557 = vunpack.c.h.b16 %v1144
        %v1558 = vunpack.c.l.b16 %v1145
        %v1559 = vunpack.c.h.b16 %v1145
        %v1560 = vunpack.c.l.b16 %v1146
        %v1561 = vunpack.c.h.b16 %v1146
        %v1562 = vunpack.c.l.b16 %v1147
        %v1563 = vunpack.c.h.b16 %v1147
        %v1564 = vunpack.c.l.b16 %v1148
        %v1565 = vunpack.c.h.b16 %v1148
        %v1566 = vunpack.c.l.b16 %v1149
        %v1567 = vunpack.c.h.b16 %v1149
        %v1568 = vunpack.c.l.b16 %v1150
        %v1569 = vunpack.c.h.b16 %v1150
        %v1570 = vunpack.c.l.b16 %v1151
        %v1571 = vunpack.c.h.b16 %v1151
        %v1572 = vunpack.c.l.b16 %v1152
        %v1573 = vunpack.c.h.b16 %v1152
        %v1574 = vunpack.c.l.b16 %v1153
        %v1575 = vunpack.c.h.b16 %v1153
        %v1576 = vunpack.c.l.b16 %v1154
        %v1577 = vunpack.c.h.b16 %v1154
        %v1578 = vunpack.c.l.b16 %v1155
        %v1579 = vunpack.c.h.b16 %v1155
        %v1580 = vunpack.c.l.b16 %v1156
        %v1581 = vunpack.c.h.b16 %v1156
        %v1582 = vunpack.c.l.b16 %v1157
        %v1583 = vunpack.c.h.b16 %v1157
        %v1584 = vunpack.c.l.b16 %v1158
        %v1585 = vunpack.c.h.b16 %v1158
        %v1586 = vunpack.c.l.b16 %v1159
        %v1587 = vunpack.c.h.b16 %v1159
        %v1588 = vunpack.c.l.b16 %v1160
        %v1589 = vunpack.c.h.b16 %v1160
        %v1590 = vunpack.c.l.b16 %v1161
        %v1591 = vunpack.c.h.b16 %v1161
        %v1592 = vunpack.c.l.b16 %v1162
        %v1593 = vunpack.c.h.b16 %v1162
        %v1594 = vunpack.c.l.b16 %v1163
        %v1595 = vunpack.c.h.b16 %v1163
        %v1596 = vunpack.c.l.b16 %v1164
        %v1597 = vunpack.c.h.b16 %v1164
        %v1598 = vunpack.c.l.b16 %v1165
        %v1599 = vunpack.c.h.b16 %v1165
        %v1600 = vunpack.c.l.b16 %v1166
        %v1601 = vunpack.c.h.b16 %v1166
        %v1602 = vunpack.c.l.b16 %v1167
        %v1603 = vunpack.c.h.b16 %v1167
        %v1604 = vunpack.c.l.b16 %v1168
        %v1605 = vunpack.c.h.b16 %v1168
        %v1606 = vunpack.c.l.b16 %v1169
        %v1607 = vunpack.c.h.b16 %v1169
        %v1608 = vunpack.c.l.b16 %v1170
        %v1609 = vunpack.c.h.b16 %v1170
        %v1610 = vunpack.c.l.b16 %v1171
        %v1611 = vunpack.c.h.b16 %v1171
        %v1612 = vunpack.c.l.b16 %v1172
        %v1613 = vunpack.c.h.b16 %v1172
        %v1614 = vunpack.c.l.b16 %v1173
        %v1615 = vunpack.c.h.b16 %v1173
        %v1616 = vunpack.c.l.b16 %v1174
        %v1617 = vunpack.c.h.b16 %v1174
        %v1618 = vunpack.c.l.b16 %v1175
        %v1619 = vunpack.c.h.b16 %v1175
        %v1620 = vunpack.c.l.b16 %v1176
        %v1621 = vunpack.c.h.b16 %v1176
        %v1622 = vunpack.c.l.b16 %v1177
        %v1623 = vunpack.c.h.b16 %v1177
        %v1624 = vunpack.c.l.b16 %v1178
        %v1625 = vunpack.c.h.b16 %v1178
        %v1626 = vunpack.c.l.b16 %v1179
        %v1627 = vunpack.c.h.b16 %v1179
        %v1628 = vunpack.c.l.b16 %v1180
        %v1629 = vunpack.c.h.b16 %v1180
        %v1630 = vunpack.c.l.b16 %v1181
        %v1631 = vunpack.c.h.b16 %v1181
        %v1632 = vunpack.c.l.b16 %v1182
        %v1633 = vunpack.c.h.b16 %v1182
        %v1634 = vunpack.c.l.b16 %v1183
        %v1635 = vunpack.c.h.b16 %v1183
        %v1636 = vunpack.c.l.b16 %v1184
        %v1637 = vunpack.c.h.b16 %v1184
        %v1638 = vunpack.c.l.b16 %v1185
        %v1639 = vunpack.c.h.b16 %v1185
        %v1640 = vunpack.c.l.b16 %v1186
        %v1641 = vunpack.c.h.b16 %v1186
        %v1642 = vunpack.c.l.b16 %v1187
        %v1643 = vunpack.c.h.b16 %v1187
        %v1644 = vunpack.c.l.b16 %v1188
        %v1645 = vunpack.c.h.b16 %v1188
        %v1646 = vunpack.c.l.b16 %v1189
        %v1647 = vunpack.c.h.b16 %v1189
        %v1648 = vunpack.c.l.b16 %v1190
        %v1649 = vunpack.c.h.b16 %v1190
        %v1650 = vunpack.c.l.b16 %v1191
        %v1651 = vunpack.c.h.b16 %v1191
        %v1652 = vunpack.c.l.b16 %v1192
        %v1653 = vunpack.c.h.b16 %v1192
        %v1654 = vunpack.c.l.b16 %v1193
        %v1655 = vunpack.c.h.b16 %v1193
        %v1656 = vunpack.c.l.b16 %v1194
        %v1657 = vunpack.c.h.b16 %v1194
        %v1658 = vunpack.c.l.b16 %v1195
        %v1659 = vunpack.c.h.b16 %v1195
        %v1660 = vunpack.c.l.b16 %v1196
        %v1661 = vunpack.c.h.b16 %v1196
        %v1662 = vunpack.c.l.b16 %v1197
        %v1663 = vunpack.c.h.b16 %v1197
        %v1664 = vunpack.c.l.b16 %v1198
        %v1665 = vunpack.c.h.b16 %v1198
        %v1666 = vunpack.c.l.b16 %v1199
        %v1667 = vunpack.c.h.b16 %v1199
        %v1668 = vpack.c.b16 %v1428, %v1412
        %v1669 = vpack.c.b16 %v1429, %v1413
        %v1670 = vpack.c.b16 %v1430, %v1414
        %v1671 = vpack.c.b16 %v1431, %v1415
        %v1672 = vpack.c.b16 %v1432, %v1416
        %v1673 = vpack.c.b16 %v1433, %v1417
        %v1674 = vpack.c.b16 %v1434, %v1418
        %v1675 = vpack.c.b16 %v1435, %v1419
        %v1676 = vpack.c.b16 %v1436, %v1420
        %v1677 = vpack.c.b16 %v1437, %v1421
        %v1678 = vpack.c.b16 %v1438, %v1422
        %v1679 = vpack.c.b16 %v1439, %v1423
        %v1680 = vpack.c.b16 %v1440, %v1424
        %v1681 = vpack.c.b16 %v1441, %v1425
        %v1682 = vpack.c.b16 %v1442, %v1426
        %v1683 = vpack.c.b16 %v1443, %v1427
        %v1684 = vpack.c.b16 %v1460, %v1444
        %v1685 = vpack.c.b16 %v1461, %v1445
        %v1686 = vpack.c.b16 %v1462, %v1446
        %v1687 = vpack.c.b16 %v1463, %v1447
        %v1688 = vpack.c.b16 %v1464, %v1448
        %v1689 = vpack.c.b16 %v1465, %v1449
        %v1690 = vpack.c.b16 %v1466, %v1450
        %v1691 = vpack.c.b16 %v1467, %v1451
        %v1692 = vpack.c.b16 %v1468, %v1452
        %v1693 = vpack.c.b16 %v1469, %v1453
        %v1694 = vpack.c.b16 %v1470, %v1454
        %v1695 = vpack.c.b16 %v1471, %v1455
        %v1696 = vpack.c.b16 %v1472, %v1456
        %v1697 = vpack.c.b16 %v1473, %v1457
        %v1698 = vpack.c.b16 %v1474, %v1458
        %v1699 = vpack.c.b16 %v1475, %v1459
        %v1700 = vpack.c.b16 %v1492, %v1476
        %v1701 = vpack.c.b16 %v1493, %v1477
        %v1702 = vpack.c.b16 %v1494, %v1478
        %v1703 = vpack.c.b16 %v1495, %v1479
        %v1704 = vpack.c.b16 %v1496, %v1480
        %v1705 = vpack.c.b16 %v1497, %v1481
        %v1706 = vpack.c.b16 %v1498, %v1482
        %v1707 = vpack.c.b16 %v1499, %v1483
        %v1708 = vpack.c.b16 %v1500, %v1484
        %v1709 = vpack.c.b16 %v1501, %v1485
        %v1710 = vpack.c.b16 %v1502, %v1486
        %v1711 = vpack.c.b16 %v1503, %v1487
        %v1712 = vpack.c.b16 %v1504, %v1488
        %v1713 = vpack.c.b16 %v1505, %v1489
        %v1714 = vpack.c.b16 %v1506, %v1490
        %v1715 = vpack.c.b16 %v1507, %v1491
        %v1716 = vpack.c.b16 %v1524, %v1508
        %v1717 = vpack.c.b16 %v1525, %v1509
        %v1718 = vpack.c.b16 %v1526, %v1510
        %v1719 = vpack.c.b16 %v1527, %v1511
        %v1720 = vpack.c.b16 %v1528, %v1512
        %v1721 = vpack.c.b16 %v1529, %v1513
        %v1722 = vpack.c.b16 %v1530, %v1514
        %v1723 = vpack.c.b16 %v1531, %v1515
        %v1724 = vpack.c.b16 %v1532, %v1516
        %v1725 = vpack.c.b16 %v1533, %v1517
        %v1726 = vpack.c.b16 %v1534, %v1518
        %v1727 = vpack.c.b16 %v1535, %v1519
        %v1728 = vpack.c.b16 %v1536, %v1520
        %v1729 = vpack.c.b16 %v1537, %v1521
        %v1730 = vpack.c.b16 %v1538, %v1522
        %v1731 = vpack.c.b16 %v1539, %v1523
        %v1732 = vpack.c.b16 %v1556, %v1540
        %v1733 = vpack.c.b16 %v1557, %v1541
        %v1734 = vpack.c.b16 %v1558, %v1542
        %v1735 = vpack.c.b16 %v1559, %v1543
        %v1736 = vpack.c.b16 %v1560, %v1544
        %v1737 = vpack.c.b16 %v1561, %v1545
        %v1738 = vpack.c.b16 %v1562, %v1546
        %v1739 = vpack.c.b16 %v1563, %v1547
        %v1740 = vpack.c.b16 %v1564, %v1548
        %v1741 = vpack.c.b16 %v1565, %v1549
        %v1742 = vpack.c.b16 %v1566, %v1550
        %v1743 = vpack.c.b16 %v1567, %v1551
        %v1744 = vpack.c.b16 %v1568, %v1552
        %v1745 = vpack.c.b16 %v1569, %v1553
        %v1746 = vpack.c.b16 %v1570, %v1554
        %v1747 = vpack.c.b16 %v1571, %v1555
        %v1748 = vpack.c.b16 %v1588, %v1572
        %v1749 = vpack.c.b16 %v1589, %v1573
        %v1750 = vpack.c.b16 %v1590, %v1574
        %v1751 = vpack.c.b16 %v1591, %v1575
        %v1752 = vpack.c.b16 %v1592, %v1576
        %v1753 = vpack.c.b16 %v1593, %v1577
        %v1754 = vpack.c.b16 %v1594, %v1578
        %v1755 = vpack.c.b16 %v1595, %v1579
        %v1756 = vpack.c.b16 %v1596, %v1580
        %v1757 = vpack.c.b16 %v1597, %v1581
        %v1758 = vpack.c.b16 %v1598, %v1582
        %v1759 = vpack.c.b16 %v1599, %v1583
        %v1760 = vpack.c.b16 %v1600, %v1584
        %v1761 = vpack.c.b16 %v1601, %v1585
        %v1762 = vpack.c.b16 %v1602, %v1586
        %v1763 = vpack.c.b16 %v1603, %v1587
        %v1764 = vpack.c.b16 %v1620, %v1604
        %v1765 = vpack.c.b16 %v1621, %v1605
        %v1766 = vpack.c.b16 %v1622, %v1606
        %v1767 = vpack.c.b16 %v1623, %v1607
        %v1768 = vpack.c.b16 %v1624, %v1608
        %v1769 = vpack.c.b16 %v1625, %v1609
        %v1770 = vpack.c.b16 %v1626, %v1610
        %v1771 = vpack.c.b16 %v1627, %v1611
        %v1772 = vpack.c.b16 %v1628, %v1612
        %v1773 = vpack.c.b16 %v1629, %v1613
        %v1774 = vpack.c.b16 %v1630, %v1614
        %v1775 = vpack.c.b16 %v1631, %v1615
        %v1776 = vpack.c.b16 %v1632, %v1616
        %v1777 = vpack.c.b16 %v1633, %v1617
        %v1778 = vpack.c.b16 %v1634, %v1618
        %v1779 = vpack.c.b16 %v1635, %v1619
        %v1780 = vpack.c.b16 %v1652, %v1636
        %v1781 = vpack.c.b16 %v1653, %v1637
        %v1782 = vpack.c.b16 %v1654, %v1638
        %v1783 = vpack.c.b16 %v1655, %v1639
        %v1784 = vpack.c.b16 %v1656, %v1640
        %v1785 = vpack.c.b16 %v1657, %v1641
        %v1786 = vpack.c.b16 %v1658, %v1642
        %v1787 = vpack.c.b16 %v1659, %v1643
        %v1788 = vpack.c.b16 %v1660, %v1644
        %v1789 = vpack.c.b16 %v1661, %v1645
        %v1790 = vpack.c.b16 %v1662, %v1646
        %v1791 = vpack.c.b16 %v1663, %v1647
        %v1792 = vpack.c.b16 %v1664, %v1648
        %v1793 = vpack.c.b16 %v1665, %v1649
        %v1794 = vpack.c.b16 %v1666, %v1650
        %v1795 = vpack.c.b16 %v1667, %v1651
        %1924 = vmatprep.subr.bf16.mxu0 %v1669
        %1925 = vmatpush1.bf16.msra.mxu0 %v1668
        %1926 = vmatprep.subr.bf16.mxu0 %v1685
        %1927 = vmatpush1.bf16.msra.mxu0 %v1684
        %1928 = vmatprep.subr.bf16.mxu0 %v1701
        %1929 = vmatpush1.bf16.msra.mxu0 %v1700
        %1930 = vmatprep.subr.bf16.mxu0 %v1717
        %1931 = vmatpush1.bf16.msra.mxu0 %v1716
        %1932 = vmatprep.subr.bf16.mxu0 %v1733
        %1933 = vmatpush1.bf16.msra.mxu0 %v1732
        %1934 = vmatprep.subr.bf16.mxu0 %v1749
        %1935 = vmatpush1.bf16.msra.mxu0 %v1748
        %1936 = vmatprep.subr.bf16.mxu0 %v1765
        %1937 = vmatpush1.bf16.msra.mxu0 %v1764
        %1938 = vmatprep.subr.bf16.mxu0 %v1781
        %1939 = vmatpush1.bf16.msra.mxu0 %v1780
        %1940 = vmatprep.subr.bf16.mxu0 0
        %1941 = vmatpush1.bf16.msra.mxu0 0
        %1942 = vmatprep.subr.bf16.mxu0 0
        %1943 = vmatpush1.bf16.msra.mxu0 0
        %1944 = vmatprep.subr.bf16.mxu0 0
        %1945 = vmatpush1.bf16.msra.mxu0 0
        %1946 = vmatprep.subr.bf16.mxu0 0
        %1947 = vmatpush1.bf16.msra.mxu0 0
        %1948 = vmatprep.subr.bf16.mxu0 0
        %1949 = vmatpush1.bf16.msra.mxu0 0
        %1950 = vmatprep.subr.bf16.mxu0 0
        %1951 = vmatpush1.bf16.msra.mxu0 0
        %1952 = vmatprep.subr.bf16.mxu0 0
        %1953 = vmatpush1.bf16.msra.mxu0 0
        %1954 = vmatprep.subr.bf16.mxu0 0
        %1955 = vmatpush1.bf16.msra.mxu0 0
        %1956 = vmatprep.mubr.bf16.mxu0 0
        %1957 = vmatmul.mubr.bf16.gmra.mrb[0].mxu0 %v1071
        %v1958 = vpop.f32.mrb[0].mxu0
        %v1959 = vadd.f32 %v1207, %v1958
        %v1960 = vpop.f32.mrb[0].mxu0
        %v1961 = vadd.f32 %v1211, %v1960
        %v1962 = vpop.f32.mrb[0].mxu0
        %v1963 = vpop.f32.mrb[0].mxu0
        %1964 = vdwg.mxu0
        %1965 = vmatprep.subr.bf16.mxu0 %v1671
        %1966 = vmatpush1.bf16.msra.mxu0 %v1670
        %1967 = vmatprep.subr.bf16.mxu0 %v1687
        %1968 = vmatpush1.bf16.msra.mxu0 %v1686
        %1969 = vmatprep.subr.bf16.mxu0 %v1703
        %1970 = vmatpush1.bf16.msra.mxu0 %v1702
        %1971 = vmatprep.subr.bf16.mxu0 %v1719
        %1972 = vmatpush1.bf16.msra.mxu0 %v1718
        %1973 = vmatprep.subr.bf16.mxu0 %v1735
        %1974 = vmatpush1.bf16.msra.mxu0 %v1734
        %1975 = vmatprep.subr.bf16.mxu0 %v1751
        %1976 = vmatpush1.bf16.msra.mxu0 %v1750
        %1977 = vmatprep.subr.bf16.mxu0 %v1767
        %1978 = vmatpush1.bf16.msra.mxu0 %v1766
        %1979 = vmatprep.subr.bf16.mxu0 %v1783
        %1980 = vmatpush1.bf16.msra.mxu0 %v1782
        %1981 = vmatprep.subr.bf16.mxu0 0
        %1982 = vmatpush1.bf16.msra.mxu0 0
        %1983 = vmatprep.subr.bf16.mxu0 0
        %1984 = vmatpush1.bf16.msra.mxu0 0
        %1985 = vmatprep.subr.bf16.mxu0 0
        %1986 = vmatpush1.bf16.msra.mxu0 0
        %1987 = vmatprep.subr.bf16.mxu0 0
        %1988 = vmatpush1.bf16.msra.mxu0 0
        %1989 = vmatprep.subr.bf16.mxu0 0
        %1990 = vmatpush1.bf16.msra.mxu0 0
        %1991 = vmatprep.subr.bf16.mxu0 0
        %1992 = vmatpush1.bf16.msra.mxu0 0
        %1993 = vmatprep.subr.bf16.mxu0 0
        %1994 = vmatpush1.bf16.msra.mxu0 0
        %1995 = vmatprep.subr.bf16.mxu0 0
        %1996 = vmatpush1.bf16.msra.mxu0 0
        %1997 = vmatprep.mubr.bf16.mxu0 0
        %1998 = vmatmul.mubr.bf16.gmra.mrb[0].mxu0 %v1071
        %v1999 = vpop.f32.mrb[0].mxu0
        %v2000 = vadd.f32 %v1215, %v1999
        %v2001 = vpop.f32.mrb[0].mxu0
        %v2002 = vadd.f32 %v1219, %v2001
        %v2003 = vpop.f32.mrb[0].mxu0
        %v2004 = vpop.f32.mrb[0].mxu0
        %2005 = vdwg.mxu0
        %2006 = vmatprep.subr.bf16.mxu0 %v1673
        %2007 = vmatpush1.bf16.msra.mxu0 %v1672
        %2008 = vmatprep.subr.bf16.mxu0 %v1689
        %2009 = vmatpush1.bf16.msra.mxu0 %v1688
        %2010 = vmatprep.subr.bf16.mxu0 %v1705
        %2011 = vmatpush1.bf16.msra.mxu0 %v1704
        %2012 = vmatprep.subr.bf16.mxu0 %v1721
        %2013 = vmatpush1.bf16.msra.mxu0 %v1720
        %2014 = vmatprep.subr.bf16.mxu0 %v1737
        %2015 = vmatpush1.bf16.msra.mxu0 %v1736
        %2016 = vmatprep.subr.bf16.mxu0 %v1753
        %2017 = vmatpush1.bf16.msra.mxu0 %v1752
        %2018 = vmatprep.subr.bf16.mxu0 %v1769
        %2019 = vmatpush1.bf16.msra.mxu0 %v1768
        %2020 = vmatprep.subr.bf16.mxu0 %v1785
        %2021 = vmatpush1.bf16.msra.mxu0 %v1784
        %2022 = vmatprep.subr.bf16.mxu0 0
        %2023 = vmatpush1.bf16.msra.mxu0 0
        %2024 = vmatprep.subr.bf16.mxu0 0
        %2025 = vmatpush1.bf16.msra.mxu0 0
        %2026 = vmatprep.subr.bf16.mxu0 0
        %2027 = vmatpush1.bf16.msra.mxu0 0
        %2028 = vmatprep.subr.bf16.mxu0 0
        %2029 = vmatpush1.bf16.msra.mxu0 0
        %2030 = vmatprep.subr.bf16.mxu0 0
        %2031 = vmatpush1.bf16.msra.mxu0 0
        %2032 = vmatprep.subr.bf16.mxu0 0
        %2033 = vmatpush1.bf16.msra.mxu0 0
        %2034 = vmatprep.subr.bf16.mxu0 0
        %2035 = vmatpush1.bf16.msra.mxu0 0
        %2036 = vmatprep.subr.bf16.mxu0 0
        %2037 = vmatpush1.bf16.msra.mxu0 0
        %2038 = vmatprep.mubr.bf16.mxu0 0
        %2039 = vmatmul.mubr.bf16.gmra.mrb[0].mxu0 %v1071
        %v2040 = vpop.f32.mrb[0].mxu0
        %v2041 = vadd.f32 %v1223, %v2040
        %v2042 = vpop.f32.mrb[0].mxu0
        %v2043 = vadd.f32 %v1227, %v2042
        %v2044 = vpop.f32.mrb[0].mxu0
        %v2045 = vpop.f32.mrb[0].mxu0
        %2046 = vdwg.mxu0
        %2047 = vmatprep.subr.bf16.mxu0 %v1675
        %2048 = vmatpush1.bf16.msra.mxu0 %v1674
        %2049 = vmatprep.subr.bf16.mxu0 %v1691
        %2050 = vmatpush1.bf16.msra.mxu0 %v1690
        %2051 = vmatprep.subr.bf16.mxu0 %v1707
        %2052 = vmatpush1.bf16.msra.mxu0 %v1706
        %2053 = vmatprep.subr.bf16.mxu0 %v1723
        %2054 = vmatpush1.bf16.msra.mxu0 %v1722
        %2055 = vmatprep.subr.bf16.mxu0 %v1739
        %2056 = vmatpush1.bf16.msra.mxu0 %v1738
        %2057 = vmatprep.subr.bf16.mxu0 %v1755
        %2058 = vmatpush1.bf16.msra.mxu0 %v1754
        %2059 = vmatprep.subr.bf16.mxu0 %v1771
        %2060 = vmatpush1.bf16.msra.mxu0 %v1770
        %2061 = vmatprep.subr.bf16.mxu0 %v1787
        %2062 = vmatpush1.bf16.msra.mxu0 %v1786
        %2063 = vmatprep.subr.bf16.mxu0 0
        %2064 = vmatpush1.bf16.msra.mxu0 0
        %2065 = vmatprep.subr.bf16.mxu0 0
        %2066 = vmatpush1.bf16.msra.mxu0 0
        %2067 = vmatprep.subr.bf16.mxu0 0
        %2068 = vmatpush1.bf16.msra.mxu0 0
        %2069 = vmatprep.subr.bf16.mxu0 0
        %2070 = vmatpush1.bf16.msra.mxu0 0
        %2071 = vmatprep.subr.bf16.mxu0 0
        %2072 = vmatpush1.bf16.msra.mxu0 0
        %2073 = vmatprep.subr.bf16.mxu0 0
        %2074 = vmatpush1.bf16.msra.mxu0 0
        %2075 = vmatprep.subr.bf16.mxu0 0
        %2076 = vmatpush1.bf16.msra.mxu0 0
        %2077 = vmatprep.subr.bf16.mxu0 0
        %2078 = vmatpush1.bf16.msra.mxu0 0
        %2079 = vmatprep.mubr.bf16.mxu0 0
        %2080 = vmatmul.mubr.bf16.gmra.mrb[0].mxu0 %v1071
        %v2081 = vpop.f32.mrb[0].mxu0
        %v2082 = vadd.f32 %v1231, %v2081
        %v2083 = vpop.f32.mrb[0].mxu0
        %v2084 = vadd.f32 %v1235, %v2083
        %v2085 = vpop.f32.mrb[0].mxu0
        %v2086 = vpop.f32.mrb[0].mxu0
        %2087 = vdwg.mxu0
        %2088 = vmatprep.subr.bf16.mxu0 %v1677
        %2089 = vmatpush1.bf16.msra.mxu0 %v1676
        %2090 = vmatprep.subr.bf16.mxu0 %v1693
        %2091 = vmatpush1.bf16.msra.mxu0 %v1692
        %2092 = vmatprep.subr.bf16.mxu0 %v1709
        %2093 = vmatpush1.bf16.msra.mxu0 %v1708
        %2094 = vmatprep.subr.bf16.mxu0 %v1725
        %2095 = vmatpush1.bf16.msra.mxu0 %v1724
        %2096 = vmatprep.subr.bf16.mxu0 %v1741
        %2097 = vmatpush1.bf16.msra.mxu0 %v1740
        %2098 = vmatprep.subr.bf16.mxu0 %v1757
        %2099 = vmatpush1.bf16.msra.mxu0 %v1756
        %2100 = vmatprep.subr.bf16.mxu0 %v1773
        %2101 = vmatpush1.bf16.msra.mxu0 %v1772
        %2102 = vmatprep.subr.bf16.mxu0 %v1789
        %2103 = vmatpush1.bf16.msra.mxu0 %v1788
        %2104 = vmatprep.subr.bf16.mxu0 0
        %2105 = vmatpush1.bf16.msra.mxu0 0
        %2106 = vmatprep.subr.bf16.mxu0 0
        %2107 = vmatpush1.bf16.msra.mxu0 0
        %2108 = vmatprep.subr.bf16.mxu0 0
        %2109 = vmatpush1.bf16.msra.mxu0 0
        %2110 = vmatprep.subr.bf16.mxu0 0
        %2111 = vmatpush1.bf16.msra.mxu0 0
        %2112 = vmatprep.subr.bf16.mxu0 0
        %2113 = vmatpush1.bf16.msra.mxu0 0
        %2114 = vmatprep.subr.bf16.mxu0 0
        %2115 = vmatpush1.bf16.msra.mxu0 0
        %2116 = vmatprep.subr.bf16.mxu0 0
        %2117 = vmatpush1.bf16.msra.mxu0 0
        %2118 = vmatprep.subr.bf16.mxu0 0
        %2119 = vmatpush1.bf16.msra.mxu0 0
        %2120 = vmatprep.mubr.bf16.mxu0 0
        %2121 = vmatmul.mubr.bf16.gmra.mrb[0].mxu0 %v1071
        %v2122 = vpop.f32.mrb[0].mxu0
        %v2123 = vadd.f32 %v1239, %v2122
        %v2124 = vpop.f32.mrb[0].mxu0
        %v2125 = vadd.f32 %v1243, %v2124
        %v2126 = vpop.f32.mrb[0].mxu0
        %v2127 = vpop.f32.mrb[0].mxu0
        %2128 = vdwg.mxu0
        %2129 = vmatprep.subr.bf16.mxu0 %v1679
        %2130 = vmatpush1.bf16.msra.mxu0 %v1678
        %2131 = vmatprep.subr.bf16.mxu0 %v1695
        %2132 = vmatpush1.bf16.msra.mxu0 %v1694
        %2133 = vmatprep.subr.bf16.mxu0 %v1711
        %2134 = vmatpush1.bf16.msra.mxu0 %v1710
        %2135 = vmatprep.subr.bf16.mxu0 %v1727
        %2136 = vmatpush1.bf16.msra.mxu0 %v1726
        %2137 = vmatprep.subr.bf16.mxu0 %v1743
        %2138 = vmatpush1.bf16.msra.mxu0 %v1742
        %2139 = vmatprep.subr.bf16.mxu0 %v1759
        %2140 = vmatpush1.bf16.msra.mxu0 %v1758
        %2141 = vmatprep.subr.bf16.mxu0 %v1775
        %2142 = vmatpush1.bf16.msra.mxu0 %v1774
        %2143 = vmatprep.subr.bf16.mxu0 %v1791
        %2144 = vmatpush1.bf16.msra.mxu0 %v1790
        %2145 = vmatprep.subr.bf16.mxu0 0
        %2146 = vmatpush1.bf16.msra.mxu0 0
        %2147 = vmatprep.subr.bf16.mxu0 0
        %2148 = vmatpush1.bf16.msra.mxu0 0
        %2149 = vmatprep.subr.bf16.mxu0 0
        %2150 = vmatpush1.bf16.msra.mxu0 0
        %2151 = vmatprep.subr.bf16.mxu0 0
        %2152 = vmatpush1.bf16.msra.mxu0 0
        %2153 = vmatprep.subr.bf16.mxu0 0
        %2154 = vmatpush1.bf16.msra.mxu0 0
        %2155 = vmatprep.subr.bf16.mxu0 0
        %2156 = vmatpush1.bf16.msra.mxu0 0
        %2157 = vmatprep.subr.bf16.mxu0 0
        %2158 = vmatpush1.bf16.msra.mxu0 0
        %2159 = vmatprep.subr.bf16.mxu0 0
        %2160 = vmatpush1.bf16.msra.mxu0 0
        %2161 = vmatprep.mubr.bf16.mxu0 0
        %2162 = vmatmul.mubr.bf16.gmra.mrb[0].mxu0 %v1071
        %v2163 = vpop.f32.mrb[0].mxu0
        %v2164 = vadd.f32 %v1247, %v2163
        %v2165 = vpop.f32.mrb[0].mxu0
        %v2166 = vadd.f32 %v1251, %v2165
        %v2167 = vpop.f32.mrb[0].mxu0
        %v2168 = vpop.f32.mrb[0].mxu0
        %2169 = vdwg.mxu0
        %2170 = vmatprep.subr.bf16.mxu0 %v1681
        %2171 = vmatpush1.bf16.msra.mxu0 %v1680
        %2172 = vmatprep.subr.bf16.mxu0 %v1697
        %2173 = vmatpush1.bf16.msra.mxu0 %v1696
        %2174 = vmatprep.subr.bf16.mxu0 %v1713
        %2175 = vmatpush1.bf16.msra.mxu0 %v1712
        %2176 = vmatprep.subr.bf16.mxu0 %v1729
        %2177 = vmatpush1.bf16.msra.mxu0 %v1728
        %2178 = vmatprep.subr.bf16.mxu0 %v1745
        %2179 = vmatpush1.bf16.msra.mxu0 %v1744
        %2180 = vmatprep.subr.bf16.mxu0 %v1761
        %2181 = vmatpush1.bf16.msra.mxu0 %v1760
        %2182 = vmatprep.subr.bf16.mxu0 %v1777
        %2183 = vmatpush1.bf16.msra.mxu0 %v1776
        %2184 = vmatprep.subr.bf16.mxu0 %v1793
        %2185 = vmatpush1.bf16.msra.mxu0 %v1792
        %2186 = vmatprep.subr.bf16.mxu0 0
        %2187 = vmatpush1.bf16.msra.mxu0 0
        %2188 = vmatprep.subr.bf16.mxu0 0
        %2189 = vmatpush1.bf16.msra.mxu0 0
        %2190 = vmatprep.subr.bf16.mxu0 0
        %2191 = vmatpush1.bf16.msra.mxu0 0
        %2192 = vmatprep.subr.bf16.mxu0 0
        %2193 = vmatpush1.bf16.msra.mxu0 0
        %2194 = vmatprep.subr.bf16.mxu0 0
        %2195 = vmatpush1.bf16.msra.mxu0 0
        %2196 = vmatprep.subr.bf16.mxu0 0
        %2197 = vmatpush1.bf16.msra.mxu0 0
        %2198 = vmatprep.subr.bf16.mxu0 0
        %2199 = vmatpush1.bf16.msra.mxu0 0
        %2200 = vmatprep.subr.bf16.mxu0 0
        %2201 = vmatpush1.bf16.msra.mxu0 0
        %2202 = vmatprep.mubr.bf16.mxu0 0
        %2203 = vmatmul.mubr.bf16.gmra.mrb[0].mxu0 %v1071
        %v2204 = vpop.f32.mrb[0].mxu0
        %v2205 = vadd.f32 %v1255, %v2204
        %v2206 = vpop.f32.mrb[0].mxu0
        %v2207 = vadd.f32 %v1259, %v2206
        %v2208 = vpop.f32.mrb[0].mxu0
        %v2209 = vpop.f32.mrb[0].mxu0
        %2210 = vdwg.mxu0
        %2211 = vmatprep.subr.bf16.mxu0 %v1683
        %2212 = vmatpush1.bf16.msra.mxu0 %v1682
        %2213 = vmatprep.subr.bf16.mxu0 %v1699
        %2214 = vmatpush1.bf16.msra.mxu0 %v1698
        %2215 = vmatprep.subr.bf16.mxu0 %v1715
        %2216 = vmatpush1.bf16.msra.mxu0 %v1714
        %2217 = vmatprep.subr.bf16.mxu0 %v1731
        %2218 = vmatpush1.bf16.msra.mxu0 %v1730
        %2219 = vmatprep.subr.bf16.mxu0 %v1747
        %2220 = vmatpush1.bf16.msra.mxu0 %v1746
        %2221 = vmatprep.subr.bf16.mxu0 %v1763
        %2222 = vmatpush1.bf16.msra.mxu0 %v1762
        %2223 = vmatprep.subr.bf16.mxu0 %v1779
        %2224 = vmatpush1.bf16.msra.mxu0 %v1778
        %2225 = vmatprep.subr.bf16.mxu0 %v1795
        %2226 = vmatpush1.bf16.msra.mxu0 %v1794
        %2227 = vmatprep.subr.bf16.mxu0 0
        %2228 = vmatpush1.bf16.msra.mxu0 0
        %2229 = vmatprep.subr.bf16.mxu0 0
        %2230 = vmatpush1.bf16.msra.mxu0 0
        %2231 = vmatprep.subr.bf16.mxu0 0
        %2232 = vmatpush1.bf16.msra.mxu0 0
        %2233 = vmatprep.subr.bf16.mxu0 0
        %2234 = vmatpush1.bf16.msra.mxu0 0
        %2235 = vmatprep.subr.bf16.mxu0 0
        %2236 = vmatpush1.bf16.msra.mxu0 0
        %2237 = vmatprep.subr.bf16.mxu0 0
        %2238 = vmatpush1.bf16.msra.mxu0 0
        %2239 = vmatprep.subr.bf16.mxu0 0
        %2240 = vmatpush1.bf16.msra.mxu0 0
        %2241 = vmatprep.subr.bf16.mxu0 0
        %2242 = vmatpush1.bf16.msra.mxu0 0
        %2243 = vmatprep.mubr.bf16.mxu0 0
        %2244 = vmatmul.mubr.bf16.gmra.mrb[0].mxu0 %v1071
        %v2245 = vpop.f32.mrb[0].mxu0
        %v2246 = vadd.f32 %v1263, %v2245
        %v2247 = vpop.f32.mrb[0].mxu0
        %v2248 = vadd.f32 %v1267, %v2247
        %v2249 = vpop.f32.mrb[0].mxu0
        %v2250 = vpop.f32.mrb[0].mxu0
        %2251 = vdwg.mxu0
        %s2252 = smul.u32 %s34, 2048
        %v2269 = vcombine.low %v1959, %v1961
        %v2270 = vcombine.low %v2000, %v2002
        %v2272 = vunpack.c.l.s4 1983009808
        %v2273 = vunpack.c.0.s8 %v2272
        %v2274 = vlaneseq
        %v2275 = vshrl.u32 %v2274, 7
        %v2276 = vsub.s32 %v2273, %v2275
        %v2277 = vrot.slane %v2269, %v2276
        %v2279 = vunpack.c.l.s4 1983009808
        %v2280 = vunpack.c.0.s8 %v2279
        %v2281 = vlaneseq
        %v2282 = vshrl.u32 %v2281, 7
        %v2283 = vsub.s32 %v2280, %v2282
        %v2284 = vrot.slane %v2270, %v2283
        %v2285 = vcombine.low %v2277, %v2284
        %v2286 = vcombine.low %v2041, %v2043
        %v2287 = vcombine.low %v2082, %v2084
        %v2289 = vunpack.c.l.s4 1983009808
        %v2290 = vunpack.c.0.s8 %v2289
        %v2291 = vlaneseq
        %v2292 = vshrl.u32 %v2291, 7
        %v2293 = vsub.s32 %v2290, %v2292
        %v2294 = vrot.slane %v2286, %v2293
        %v2296 = vunpack.c.l.s4 1983009808
        %v2297 = vunpack.c.0.s8 %v2296
        %v2298 = vlaneseq
        %v2299 = vshrl.u32 %v2298, 7
        %v2300 = vsub.s32 %v2297, %v2299
        %v2301 = vrot.slane %v2287, %v2300
        %v2302 = vcombine.low %v2294, %v2301
        %v2303 = vcombine.low %v2123, %v2125
        %v2304 = vcombine.low %v2164, %v2166
        %v2306 = vunpack.c.l.s4 1983009808
        %v2307 = vunpack.c.0.s8 %v2306
        %v2308 = vlaneseq
        %v2309 = vshrl.u32 %v2308, 7
        %v2310 = vsub.s32 %v2307, %v2309
        %v2311 = vrot.slane %v2303, %v2310
        %v2313 = vunpack.c.l.s4 1983009808
        %v2314 = vunpack.c.0.s8 %v2313
        %v2315 = vlaneseq
        %v2316 = vshrl.u32 %v2315, 7
        %v2317 = vsub.s32 %v2314, %v2316
        %v2318 = vrot.slane %v2304, %v2317
        %v2319 = vcombine.low %v2311, %v2318
        %v2320 = vcombine.low %v2205, %v2207
        %v2321 = vcombine.low %v2246, %v2248
        %v2323 = vunpack.c.l.s4 1983009808
        %v2324 = vunpack.c.0.s8 %v2323
        %v2325 = vlaneseq
        %v2326 = vshrl.u32 %v2325, 7
        %v2327 = vsub.s32 %v2324, %v2326
        %v2328 = vrot.slane %v2320, %v2327
        %v2330 = vunpack.c.l.s4 1983009808
        %v2331 = vunpack.c.0.s8 %v2330
        %v2332 = vlaneseq
        %v2333 = vshrl.u32 %v2332, 7
        %v2334 = vsub.s32 %v2331, %v2333
        %v2335 = vrot.slane %v2321, %v2334
        %v2336 = vcombine.low %v2328, %v2335
        %s2341 = sshra.s32 %s2252, 7
        %s2342 = sand.u32 %s2252, 127
        %s2343 = smul.addr %s2341, 2
        %s2344 = scalar_lea.vmem [#allocation21], %s2343
        %2345 = vst [vmem:[%s2344] sm:$0xff] %v2285
        %2346 = vst [vmem:[%s2344 + $0x8] sm:$0xff] %v2302
        %2347 = vst [vmem:[%s2344 + $0x10] sm:$0xff] %v2319
        %2348 = vst [vmem:[%s2344 + $0x18] sm:$0xff] %v2336
        %v2349 = vld [vmem:[#allocation4] sm:$0x3]
        %vm2350 = vcmask 1041408
        %v2351 = vsel %vm2350, %v1959, -inf
        %v2352 = vsel %vm2350, %v1961, -inf
        %v2353 = vsel %vm2350, %v2000, -inf
        %v2354 = vsel %vm2350, %v2002, -inf
        %v2355 = vsel %vm2350, %v2041, -inf
        %v2356 = vmax.f32 %v2351, %v2355
        %v2357 = vsel %vm2350, %v2043, -inf
        %v2358 = vmax.f32 %v2352, %v2357
        %v2359 = vsel %vm2350, %v2082, -inf
        %v2360 = vmax.f32 %v2353, %v2359
        %v2361 = vsel %vm2350, %v2084, -inf
        %v2362 = vmax.f32 %v2354, %v2361
        %v2363 = vsel %vm2350, %v2123, -inf
        %v2364 = vmax.f32 %v2356, %v2363
        %v2365 = vsel %vm2350, %v2125, -inf
        %v2366 = vmax.f32 %v2358, %v2365
        %v2367 = vsel %vm2350, %v2164, -inf
        %v2368 = vmax.f32 %v2360, %v2367
        %v2369 = vsel %vm2350, %v2166, -inf
        %v2370 = vmax.f32 %v2362, %v2369
        %v2371 = vsel %vm2350, %v2205, -inf
        %v2372 = vmax.f32 %v2364, %v2371
        %v2373 = vsel %vm2350, %v2207, -inf
        %v2374 = vmax.f32 %v2366, %v2373
        %v2375 = vsel %vm2350, %v2246, -inf
        %v2376 = vmax.f32 %v2368, %v2375
        %v2377 = vsel %vm2350, %v2248, -inf
        %v2378 = vmax.f32 %v2370, %v2377
        %v2379 = vmax.f32 %v2372, %v2374
        %v2380 = vmax.f32 %v2376, %v2378
        %v2381 = vmax.f32 %v2379, %v2380
        %2382 = vmax.xlane.f32.xlu0 %v2381
        %v2383 = vpop.xlane.xlu0 %2382
        %v2384 = vmax.f32 %v2349, %v2383
        %v2385 = vld [vmem:[#allocation5] sm:$0x3]
        %v2386 = vsub.f32 %v2349, %v2384
        %v2387 = vmul.f32 %v2386, 1.442695
        %v2388 = vpow.pop %v2387
        %v2389 = vmul.f32 %v2385, %v2388
        %2391 = vset.pattern.permute.xlu0 0
        %2392 = vperm.xlu0 %2391, %v2384
        %v2393 = vpop.permute.xlu0 %2392
        %v2395 = vsub.f32 %v1959, %v2393
        %v2396 = vsub.f32 %v1961, %v2393
        %v2397 = vsub.f32 %v2000, %v2393
        %v2398 = vsub.f32 %v2002, %v2393
        %v2399 = vsub.f32 %v2041, %v2393
        %v2400 = vsub.f32 %v2043, %v2393
        %v2401 = vsub.f32 %v2082, %v2393
        %v2402 = vsub.f32 %v2084, %v2393
        %v2403 = vsub.f32 %v2123, %v2393
        %v2404 = vsub.f32 %v2125, %v2393
        %v2405 = vsub.f32 %v2164, %v2393
        %v2406 = vsub.f32 %v2166, %v2393
        %v2407 = vsub.f32 %v2205, %v2393
        %v2408 = vsub.f32 %v2207, %v2393
        %v2409 = vsub.f32 %v2246, %v2393
        %v2410 = vsub.f32 %v2248, %v2393
        %v2411 = vmul.f32 %v2395, 1.442695
        %v2412 = vpow.pop %v2411
        %v2413 = vmul.f32 %v2396, 1.442695
        %v2414 = vpow.pop %v2413
        %v2415 = vmul.f32 %v2397, 1.442695
        %v2416 = vpow.pop %v2415
        %v2417 = vmul.f32 %v2398, 1.442695
        %v2418 = vpow.pop %v2417
        %v2419 = vmul.f32 %v2399, 1.442695
        %v2420 = vpow.pop %v2419
        %v2421 = vmul.f32 %v2400, 1.442695
        %v2422 = vpow.pop %v2421
        %v2423 = vmul.f32 %v2401, 1.442695
        %v2424 = vpow.pop %v2423
        %v2425 = vmul.f32 %v2402, 1.442695
        %v2426 = vpow.pop %v2425
        %v2427 = vmul.f32 %v2403, 1.442695
        %v2428 = vpow.pop %v2427
        %v2429 = vmul.f32 %v2404, 1.442695
        %v2430 = vpow.pop %v2429
        %v2431 = vmul.f32 %v2405, 1.442695
        %v2432 = vpow.pop %v2431
        %v2433 = vmul.f32 %v2406, 1.442695
        %v2434 = vpow.pop %v2433
        %v2435 = vmul.f32 %v2407, 1.442695
        %v2436 = vpow.pop %v2435
        %v2437 = vmul.f32 %v2408, 1.442695
        %v2438 = vpow.pop %v2437
        %v2439 = vmul.f32 %v2409, 1.442695
        %v2440 = vpow.pop %v2439
        %v2441 = vmul.f32 %v2410, 1.442695
        %v2442 = vpow.pop %v2441
        %v2443 = vsel %vm2350, %v2412, 0.0
        %v2444 = vsel %vm2350, %v2414, 0.0
        %v2445 = vadd.f32 %v2443, %v2444
        %v2446 = vsel %vm2350, %v2416, 0.0
        %v2447 = vadd.f32 %v2445, %v2446
        %v2448 = vsel %vm2350, %v2418, 0.0
        %v2449 = vadd.f32 %v2447, %v2448
        %v2450 = vsel %vm2350, %v2420, 0.0
        %v2451 = vadd.f32 %v2449, %v2450
        %v2452 = vsel %vm2350, %v2422, 0.0
        %v2453 = vadd.f32 %v2451, %v2452
        %v2454 = vsel %vm2350, %v2424, 0.0
        %v2455 = vadd.f32 %v2453, %v2454
        %v2456 = vsel %vm2350, %v2426, 0.0
        %v2457 = vadd.f32 %v2455, %v2456
        %v2458 = vsel %vm2350, %v2428, 0.0
        %v2459 = vadd.f32 %v2457, %v2458
        %v2460 = vsel %vm2350, %v2430, 0.0
        %v2461 = vadd.f32 %v2459, %v2460
        %v2462 = vsel %vm2350, %v2432, 0.0
        %v2463 = vadd.f32 %v2461, %v2462
        %v2464 = vsel %vm2350, %v2434, 0.0
        %v2465 = vadd.f32 %v2463, %v2464
        %v2466 = vsel %vm2350, %v2436, 0.0
        %v2467 = vadd.f32 %v2465, %v2466
        %v2468 = vsel %vm2350, %v2438, 0.0
        %v2469 = vadd.f32 %v2467, %v2468
        %v2470 = vsel %vm2350, %v2440, 0.0
        %v2471 = vadd.f32 %v2469, %v2470
        %v2472 = vsel %vm2350, %v2442, 0.0
        %v2473 = vadd.f32 %v2471, %v2472
        %2474 = vadd.xlane.f32.xlu0 %v2473
        %v2475 = vpop.xlane.xlu0 %2474
        %v2476 = vadd.f32 %v2389, %v2475
        %vm2477 = vcmask 1024
        %2478 = vst.msk [vmem:[#allocation5] sm:$0x3] %vm2477, %v2476
        %2479 = vst.msk [vmem:[#allocation4] sm:$0x3] %vm2477, %v2384
        %p2480 = scmp.eq.s32.totalorder %s34, 2
        // Predicated region
        $region89: #{tpu_custom_call.1} parent=47 // pred_check
          %p2481 = pneg %p2480
        $region90: #{tpu_custom_call.1} parent=47 // pred_check_branch
          %2483 = sbr.rel (%p2481) target = $region92
        $region91: #{tpu_custom_call.1} parent=47 // pred_region
          %v2484 = vld [vmem:[#allocation21] sm:$0xff]
          %v2485 = vld [vmem:[#allocation21 + $0x8] sm:$0xff]
          %v2486 = vld [vmem:[#allocation21 + $0x10] sm:$0xff]
          %v2487 = vld [vmem:[#allocation21 + $0x18] sm:$0xff]
          %v2488 = vld [vmem:[#allocation21 + $0x20] sm:$0xff]
          %v2489 = vld [vmem:[#allocation21 + $0x28] sm:$0xff]
          %v2490 = vld [vmem:[#allocation21 + $0x30] sm:$0xff]
          %v2491 = vld [vmem:[#allocation21 + $0x38] sm:$0xff]
          %v2492 = vld [vmem:[#allocation21 + $0x40] sm:$0xff]
          %v2493 = vld [vmem:[#allocation21 + $0x48] sm:$0xff]
          %v2494 = vld [vmem:[#allocation21 + $0x50] sm:$0xff]
          %v2495 = vld [vmem:[#allocation21 + $0x58] sm:$0xff]
          %v2496 = vld [vmem:[#allocation4] sm:$0x3]
          %v2497 = vld [vmem:[#allocation5] sm:$0x3]
          %v2498 = vlog2.pop %v2497
          %v2499 = vmul.f32 %v2498, 0.6931472
          %v2500 = vadd.f32 %v2496, %v2499
          %2502 = vset.pattern.permute.xlu0 0
          %2503 = vperm.xlu0 %2502, %v2500
          %v2504 = vpop.permute.xlu0 %2503
          %v2506 = vunpack.c.l.s4 269488144
          %v2507 = vunpack.c.0.s8 %v2506
          %v2508 = vlaneseq
          %v2509 = vshrl.u32 %v2508, 7
          %v2510 = vsub.s32 %v2507, %v2509
          %v2511 = vrot.slane %v2504, %v2510
          %v2513 = vsub.f32 %v2484, %v2511
          %v2514 = vsub.f32 %v2485, %v2511
          %v2515 = vsub.f32 %v2486, %v2511
          %v2516 = vsub.f32 %v2487, %v2511
          %v2517 = vsub.f32 %v2488, %v2511
          %v2518 = vsub.f32 %v2489, %v2511
          %v2519 = vsub.f32 %v2490, %v2511
          %v2520 = vsub.f32 %v2491, %v2511
          %v2521 = vsub.f32 %v2492, %v2511
          %v2522 = vsub.f32 %v2493, %v2511
          %v2523 = vsub.f32 %v2494, %v2511
          %v2524 = vsub.f32 %v2495, %v2511
          %2525 = vst [vmem:[#allocation21] sm:$0xff] %v2513
          %2526 = vst [vmem:[#allocation21 + $0x8] sm:$0xff] %v2514
          %2527 = vst [vmem:[#allocation21 + $0x10] sm:$0xff] %v2515
          %2528 = vst [vmem:[#allocation21 + $0x18] sm:$0xff] %v2516
          %2529 = vst [vmem:[#allocation21 + $0x20] sm:$0xff] %v2517
          %2530 = vst [vmem:[#allocation21 + $0x28] sm:$0xff] %v2518
          %2531 = vst [vmem:[#allocation21 + $0x30] sm:$0xff] %v2519
          %2532 = vst [vmem:[#allocation21 + $0x38] sm:$0xff] %v2520
          %2533 = vst [vmem:[#allocation21 + $0x40] sm:$0xff] %v2521
          %2534 = vst [vmem:[#allocation21 + $0x48] sm:$0xff] %v2522
          %2535 = vst [vmem:[#allocation21 + $0x50] sm:$0xff] %v2523
          %2536 = vst [vmem:[#allocation21 + $0x58] sm:$0xff] %v2524
        $region92: #{tpu_custom_call.1} parent=47 // pred_fallthru
          _
        // Predicated region
        $region93: #{tpu_custom_call.1} parent=47 // pred_check
          %p2537 = pneg %p204
        $region94: #{tpu_custom_call.1} parent=47 // pred_check_branch
          %2539 = sbr.rel (%p2537) target = $region96
        $region95: #{tpu_custom_call.1} parent=47 // pred_region
          %s2541 = ssub.s32 1536, 1536
          %2542 = vsyncadd [#allocation11], %s2541
          %s2544 = sshll.u32 [#allocation21], 4
          %s2545 = int_to_ptr.vmem [resolvable:$true] %s2544
          %2547 = dma.vmem_to_hbm [thread:$0]  %s2545, 1536, %s9, [#allocation11]
        $region96: #{tpu_custom_call.1} parent=47 // pred_fallthru
          _
        // Predicated region
        $region97: #{tpu_custom_call.1} parent=47 // pred_check
          %p2548 = pneg %p225
        $region98: #{tpu_custom_call.1} parent=47 // pred_check_branch
          %2550 = sbr.rel (%p2548) target = $region100
        $region99: #{tpu_custom_call.1} parent=47 // pred_region
          %s2552 = ssub.s32 64, 64
          %2553 = vsyncadd [#allocation23], %s2552
          %s2555 = sshll.u32 [#allocation22], 4
          %s2556 = int_to_ptr.vmem [resolvable:$true] %s2555
          %2558 = dma.vmem_to_hbm [thread:$0]  %s2556, 64, %s10, [#allocation23]
        $region100: #{tpu_custom_call.1} parent=47 // pred_fallthru
          _
        // Predicated region
        $region101: #{tpu_custom_call.1} parent=47 // pred_check
          %p2559 = pneg %p204
        $region102: #{tpu_custom_call.1} parent=47 // pred_check_branch
          %2561 = sbr.rel (%p2559) target = $region104
        $region103: #{tpu_custom_call.1} parent=47 // pred_region
          %2562 = dma.done [#allocation11], 1536
        $region104: #{tpu_custom_call.1} parent=47 // pred_fallthru
          _
        // Predicated region
        $region105: #{tpu_custom_call.1} parent=47 // pred_check
          %p2563 = pneg %p225
        $region106: #{tpu_custom_call.1} parent=47 // pred_check_branch
          %2565 = sbr.rel (%p2563) target = $region108
        $region107: #{tpu_custom_call.1} parent=47 // pred_region
          %2566 = dma.done [#allocation23], 64
        $region108: #{tpu_custom_call.1} parent=47 // pred_fallthru
          _
      $region48: #{tpu_custom_call.1} parent=5 // pred_fallthru
        _
      %p2567 = scmp.le.s32.totalorder 2, %s29
      // Predicated region
      $region109: #{tpu_custom_call.1} parent=5 // pred_check
        %p2568 = pneg %p2567
      $region110: #{tpu_custom_call.1} parent=5 // pred_check_branch
        %2570 = sbr.rel (%p2568) target = $region112
      $region111: #{tpu_custom_call.1} parent=5 // pred_region
        %s2571 = ssub.s32 %s29, 2
      $region112: #{tpu_custom_call.1} parent=5 // pred_fallthru
        _
    $region6: #{tpu_custom_call.1} parent=1 // loop_footer
      %s33 = sadd.s32 1, %s29
    $region7: #{tpu_custom_call.1} parent=1 // loop_footer_branch
      %28 = sbr.rel target = $region3
    $region8: #{tpu_custom_call.1} parent=1 // loop_exit
      _
    %2572 = vsyncpa [#allocation10], 1
    %s2573 = scalar_lea.sflag [#allocation10], 1
    %2574 = vsyncpa %s2573, 1
    %2575 = vsyncpa [#allocation13], 1
    %2576 = vsyncpa [#allocation16], 1
    %2577 = vsyncpa [#allocation19], 1
    %s2578 = scalar_lea.sflag [#allocation19], 1
    %2579 = vsyncpa %s2578, 1
    %2580 = vsyncpa [#allocation11], 1
    %s2581 = scalar_lea.sflag [#allocation11], 1
    %2582 = vsyncpa %s2581, 1
    %2583 = vsyncpa [#allocation23], 1
  %2584 = vsyncmov [#allocation6]
  %s2585 = vpop.sfrf %2584
  %p2586 = scmp.eq.s32.totalorder %s2585, 0
  %p2587 = pneg %p2586
  %2589 = shalt.err (%p2587)
  %s2590 = scalar_lea.sflag [#allocation6], 1
  %2591 = vsyncmov %s2590
  %s2592 = vpop.sfrf %2591
  %p2593 = scmp.eq.s32.totalorder %s2592, 0
  %p2594 = pneg %p2593
  %2596 = shalt.err (%p2594)

</llo_original>
